<compile_context>
chip_gen: v7x
topology: tpu7x:2x2x1
jax: 0.10.0
libtpu: 0.0.40
codegen_flags: <defaults>
</compile_context>

<pallas_src>
import functools

import jax
import jax.numpy as jnp
from jax import lax
from jax.experimental import pallas as pl
from jax.experimental.pallas import tpu as pltpu

INPUT_SIZE = 120
HIDDEN = 64
NUM_CLASSES = 10

# Hardware-friendly padded sizes (f32 vreg = (8 sublanes, 128 lanes)).
SUBLANE = 8
IP = 128            # input features 120 -> 128
HP = 128            # each gate padded to a full 128-lane block
CP = 128            # logits 10 -> 128 so the output store is lane-dense


def _lstm_kernel(x_ref, wih_ref, whh_ref, b_ref, wout_ref, bout_ref,
                 out_ref, xw_sc, *, seq_len, bp):
    # Hoisted, time-invariant input projection: one (T*BP, IP) @ (IP, 4*HP)
    # matmul + bias instead of T small serialized ones on the recurrent path.
    xw_sc[...] = (
        jnp.dot(x_ref[...], wih_ref[...], preferred_element_type=jnp.float32)
        + b_ref[...])

    h = jnp.zeros((bp, HP), jnp.float32)
    c = jnp.zeros((bp, HP), jnp.float32)

    # Fully-unrolled recurrence (seq_len is a static Python int). Every slice
    # below falls on (8, 128) tile boundaries, so it is a zero-cost static view.
    # Padded gate lanes see exactly 0 pre-activations -> padded h lanes stay 0.
    for t in range(seq_len):
        gates = (xw_sc[t * bp:(t + 1) * bp, :]
                 + jnp.dot(h, whh_ref[...], preferred_element_type=jnp.float32))
        i_g = jax.nn.sigmoid(gates[:, 0 * HP:1 * HP])
        f_g = jax.nn.sigmoid(gates[:, 1 * HP:2 * HP])
        g_g = jnp.tanh(gates[:, 2 * HP:3 * HP])
        o_g = jax.nn.sigmoid(gates[:, 3 * HP:4 * HP])
        c = f_g * c + i_g * g_g
        h = o_g * jnp.tanh(c)

    out_ref[...] = (
        jnp.dot(h, wout_ref[...], preferred_element_type=jnp.float32)
        + bout_ref[...]).astype(out_ref.dtype)


def _pad_gate_cols(w_t):
    """(rows, 4*HIDDEN) -> (rows, 4*HP): gate g's HIDDEN cols land at g*HP."""
    rows = w_t.shape[0]
    w4 = w_t.reshape(rows, 4, HIDDEN)
    w4 = jnp.pad(w4, ((0, 0), (0, 0), (0, HP - HIDDEN)))
    return w4.reshape(rows, 4 * HP)


def lstm_forward(x, w_ih, w_hh, b_ih, b_hh, w_out, b_out):
    """x: (B, T, INPUT_SIZE) float32 (PyTorch batch_first). Returns (B, 10)."""
    B, T, IN = x.shape
    assert IN == INPUT_SIZE
    BP = max(SUBLANE, ((B + SUBLANE - 1) // SUBLANE) * SUBLANE)

    # Time-major, batch/feature zero-padded, flattened to (T*BP, IP).
    x_tm = jnp.transpose(x, (1, 0, 2)).astype(jnp.float32)        # (T, B, IN)
    x_pad = jnp.pad(x_tm, ((0, 0), (0, BP - B), (0, IP - IN)))
    x_pad = x_pad.reshape(T * BP, IP)

    # Weights pre-transposed and gate-padded (PyTorch gate order i, f, g, o).
    wih_pad = jnp.pad(_pad_gate_cols(w_ih.T.astype(jnp.float32)),
                      ((0, IP - INPUT_SIZE), (0, 0)))             # (IP, 4*HP)
    whh_pad = jnp.pad(_pad_gate_cols(w_hh.T.astype(jnp.float32)),
                      ((0, HP - HIDDEN), (0, 0)))                 # (HP, 4*HP)
    b_pad = _pad_gate_cols(
        (b_ih + b_hh).astype(jnp.float32).reshape(1, 4 * HIDDEN))  # (1, 4*HP)
    wout_pad = jnp.pad(w_out.T.astype(jnp.float32),
                       ((0, HP - HIDDEN), (0, CP - NUM_CLASSES)))  # (HP, CP)
    bout_pad = jnp.pad(b_out.astype(jnp.float32).reshape(1, NUM_CLASSES),
                       ((0, 0), (0, CP - NUM_CLASSES)))            # (1, CP)

    # Single invocation (no grid) -> every operand is a full VMEM block; no
    # per-step pipelining buffers are allocated for the constant weights.
    vmem_spec = pl.BlockSpec(memory_space=pltpu.MemorySpace.VMEM)
    out_pad = pl.pallas_call(
        functools.partial(_lstm_kernel, seq_len=T, bp=BP),
        out_shape=jax.ShapeDtypeStruct((BP, CP), jnp.float32),
        in_specs=[vmem_spec] * 6,
        out_specs=vmem_spec,
        scratch_shapes=[pltpu.VMEM((T * BP, 4 * HP), jnp.float32)],
    )(x_pad, wih_pad, whh_pad, b_pad, wout_pad, bout_pad)

    return out_pad[:B, :NUM_CLASSES]


def lstm_reference(x, w_ih, w_hh, b_ih, b_hh, w_out, b_out):
    """Pure-JAX reference matching PyTorch nn.LSTM + Linear semantics."""
    B, T, _ = x.shape
    H = HIDDEN

    def step(carry, x_t):
        h, c = carry
        gates = x_t @ w_ih.T + b_ih + h @ w_hh.T + b_hh
        i = jax.nn.sigmoid(gates[:, 0 * H:1 * H])
        f = jax.nn.sigmoid(gates[:, 1 * H:2 * H])
        g = jnp.tanh(gates[:, 2 * H:3 * H])
        o = jax.nn.sigmoid(gates[:, 3 * H:4 * H])
        c = f * c + i * g
        h = o * jnp.tanh(c)
        return (h, c), None

    h0 = jnp.zeros((B, H), jnp.float32)
    c0 = jnp.zeros((B, H), jnp.float32)
    (h, _), _ = lax.scan(step, (h0, c0), jnp.transpose(x, (1, 0, 2)))
    return h @ w_out.T + b_out


if __name__ == "__main__":
    key = jax.random.PRNGKey(0)
    B, T = 2, 8
    k = jax.random.split(key, 8)

    # Deterministic parameter init (uniform in [-1/sqrt(H), 1/sqrt(H)], like PyTorch).
    s = 1.0 / jnp.sqrt(jnp.float32(HIDDEN))
    w_ih = jax.random.uniform(k[0], (4 * HIDDEN, INPUT_SIZE), jnp.float32, -s, s)
    w_hh = jax.random.uniform(k[1], (4 * HIDDEN, HIDDEN), jnp.float32, -s, s)
    b_ih = jax.random.uniform(k[2], (4 * HIDDEN,), jnp.float32, -s, s)
    b_hh = jax.random.uniform(k[3], (4 * HIDDEN,), jnp.float32, -s, s)
    w_out = jax.random.uniform(k[4], (NUM_CLASSES, HIDDEN), jnp.float32, -s, s)
    b_out = jax.random.uniform(k[5], (NUM_CLASSES,), jnp.float32, -s, s)

    x = jax.random.normal(k[6], (B, T, INPUT_SIZE), jnp.float32)

    out = lstm_forward(x, w_ih, w_hh, b_ih, b_hh, w_out, b_out)
    out = jax.block_until_ready(out)

    ref = lstm_reference(x, w_ih, w_hh, b_ih, b_hh, w_out, b_out)
    assert out.shape == (B, NUM_CLASSES)
    assert jnp.allclose(out, ref, atol=1e-4, rtol=1e-4), (out, ref)

    print("KERNEL_OK")
</pallas_src>

<mosaic_0001>
module attributes {stable_mosaic.version = 11 : i64} {
  func.func @_lstm_kernel(%arg0: memref<64x128xf32, #tpu.memory_space<vmem>>, %arg1: memref<128x512xf32, #tpu.memory_space<vmem>>, %arg2: memref<128x512xf32, #tpu.memory_space<vmem>>, %arg3: memref<1x512xf32, #tpu.memory_space<vmem>>, %arg4: memref<128x128xf32, #tpu.memory_space<vmem>>, %arg5: memref<1x128xf32, #tpu.memory_space<vmem>>, %arg6: memref<8x128xf32, #tpu.memory_space<vmem>>, %arg7: memref<64x512xf32, #tpu.memory_space<vmem>>) attributes {dimension_semantics = [], scalar_prefetch = 0 : i64, scratch_operands = 1 : i64, tpu.core_type = #tpu.core_type<tc>} {
    %c0 = arith.constant 0 : index
    %c0_0 = arith.constant 0 : index
    %0 = vector.load %arg0[%c0, %c0_0] : memref<64x128xf32, #tpu.memory_space<vmem>>, vector<64x128xf32>
    %c0_1 = arith.constant 0 : index
    %c0_2 = arith.constant 0 : index
    %1 = vector.load %arg1[%c0_1, %c0_2] : memref<128x512xf32, #tpu.memory_space<vmem>>, vector<128x512xf32>
    %cst = arith.constant dense<0.000000e+00> : vector<64x512xf32>
    %2 = tpu.matmul %0, %1, %cst {dimension_numbers = #tpu.dot_dimension_numbers<[1], [0], [0], [1], [0, 0, 1, 1], [], []>} : vector<64x128xf32>, vector<128x512xf32>, vector<64x512xf32> -> vector<64x512xf32>
    %c0_3 = arith.constant 0 : index
    %c0_4 = arith.constant 0 : index
    %3 = vector.load %arg3[%c0_3, %c0_4] : memref<1x512xf32, #tpu.memory_space<vmem>>, vector<1x512xf32>
    %4 = vector.broadcast %3 : vector<1x512xf32> to vector<64x512xf32>
    %5 = arith.addf %2, %4 : vector<64x512xf32>
    %c0_5 = arith.constant 0 : index
    %c0_6 = arith.constant 0 : index
    %6 = vector.load %arg7[%c0_5, %c0_6] : memref<64x512xf32, #tpu.memory_space<vmem>>, vector<64x512xf32>
    tpu.vector_store %arg7[%c0_5, %c0_6], %5 {strides = array<i32>} : memref<64x512xf32, #tpu.memory_space<vmem>>, vector<64x512xf32>,
    %cst_7 = arith.constant 0.000000e+00 : f32
    %7 = vector.broadcast %cst_7 : f32 to vector<8x128xf32>
    %cst_8 = arith.constant 0.000000e+00 : f32
    %8 = vector.broadcast %cst_8 : f32 to vector<8x128xf32>
    %c0_9 = arith.constant 0 : index
    %c0_10 = arith.constant 0 : index
    %9 = vector.load %arg7[%c0_9, %c0_10] : memref<64x512xf32, #tpu.memory_space<vmem>>, vector<8x512xf32>
    %c0_11 = arith.constant 0 : index
    %c0_12 = arith.constant 0 : index
    %10 = vector.load %arg2[%c0_11, %c0_12] : memref<128x512xf32, #tpu.memory_space<vmem>>, vector<128x512xf32>
    %cst_13 = arith.constant dense<0.000000e+00> : vector<8x512xf32>
    %11 = tpu.matmul %7, %10, %cst_13 {dimension_numbers = #tpu.dot_dimension_numbers<[1], [0], [0], [1], [0, 0, 1, 1], [], []>} : vector<8x128xf32>, vector<128x512xf32>, vector<8x512xf32> -> vector<8x512xf32>
    %12 = arith.addf %9, %11 : vector<8x512xf32>
    %13 = vector.extract_strided_slice %12 {offsets = [0, 0], sizes = [8, 128], strides = [1, 1]} : vector<8x512xf32> to vector<8x128xf32>
    %14 = arith.negf %13 : vector<8x128xf32>
    %15 = math.exp %14 : vector<8x128xf32>
    %cst_14 = arith.constant 1.000000e+00 : f32
    %16 = vector.broadcast %cst_14 : f32 to vector<8x128xf32>
    %17 = arith.addf %16, %15 : vector<8x128xf32>
    %18 = arith.divf %16, %17 : vector<8x128xf32>
    %19 = vector.extract_strided_slice %12 {offsets = [0, 128], sizes = [8, 128], strides = [1, 1]} : vector<8x512xf32> to vector<8x128xf32>
    %20 = arith.negf %19 : vector<8x128xf32>
    %21 = math.exp %20 : vector<8x128xf32>
    %cst_15 = arith.constant 1.000000e+00 : f32
    %22 = vector.broadcast %cst_15 : f32 to vector<8x128xf32>
    %23 = arith.addf %22, %21 : vector<8x128xf32>
    %24 = arith.divf %22, %23 : vector<8x128xf32>
    %25 = vector.extract_strided_slice %12 {offsets = [0, 256], sizes = [8, 128], strides = [1, 1]} : vector<8x512xf32> to vector<8x128xf32>
    %26 = math.tanh %25 : vector<8x128xf32>
    %27 = vector.extract_strided_slice %12 {offsets = [0, 384], sizes = [8, 128], strides = [1, 1]} : vector<8x512xf32> to vector<8x128xf32>
    %28 = arith.negf %27 : vector<8x128xf32>
    %29 = math.exp %28 : vector<8x128xf32>
    %cst_16 = arith.constant 1.000000e+00 : f32
    %30 = vector.broadcast %cst_16 : f32 to vector<8x128xf32>
    %31 = arith.addf %30, %29 : vector<8x128xf32>
    %32 = arith.divf %30, %31 : vector<8x128xf32>
    %33 = arith.mulf %24, %8 : vector<8x128xf32>
    %34 = arith.mulf %18, %26 : vector<8x128xf32>
    %35 = arith.addf %33, %34 : vector<8x128xf32>
    %36 = math.tanh %35 : vector<8x128xf32>
    %37 = arith.mulf %32, %36 : vector<8x128xf32>
    %c8 = arith.constant 8 : index
    %c0_17 = arith.constant 0 : index
    %38 = vector.load %arg7[%c8, %c0_17] : memref<64x512xf32, #tpu.memory_space<vmem>>, vector<8x512xf32>
    %c0_18 = arith.constant 0 : index
    %c0_19 = arith.constant 0 : index
    %39 = vector.load %arg2[%c0_18, %c0_19] : memref<128x512xf32, #tpu.memory_space<vmem>>, vector<128x512xf32>
    %cst_20 = arith.constant dense<0.000000e+00> : vector<8x512xf32>
    %40 = tpu.matmul %37, %39, %cst_20 {dimension_numbers = #tpu.dot_dimension_numbers<[1], [0], [0], [1], [0, 0, 1, 1], [], []>} : vector<8x128xf32>, vector<128x512xf32>, vector<8x512xf32> -> vector<8x512xf32>
    %41 = arith.addf %38, %40 : vector<8x512xf32>
    %42 = vector.extract_strided_slice %41 {offsets = [0, 0], sizes = [8, 128], strides = [1, 1]} : vector<8x512xf32> to vector<8x128xf32>
    %43 = arith.negf %42 : vector<8x128xf32>
    %44 = math.exp %43 : vector<8x128xf32>
    %cst_21 = arith.constant 1.000000e+00 : f32
    %45 = vector.broadcast %cst_21 : f32 to vector<8x128xf32>
    %46 = arith.addf %45, %44 : vector<8x128xf32>
    %47 = arith.divf %45, %46 : vector<8x128xf32>
    %48 = vector.extract_strided_slice %41 {offsets = [0, 128], sizes = [8, 128], strides = [1, 1]} : vector<8x512xf32> to vector<8x128xf32>
    %49 = arith.negf %48 : vector<8x128xf32>
    %50 = math.exp %49 : vector<8x128xf32>
    %cst_22 = arith.constant 1.000000e+00 : f32
    %51 = vector.broadcast %cst_22 : f32 to vector<8x128xf32>
    %52 = arith.addf %51, %50 : vector<8x128xf32>
    %53 = arith.divf %51, %52 : vector<8x128xf32>
    %54 = vector.extract_strided_slice %41 {offsets = [0, 256], sizes = [8, 128], strides = [1, 1]} : vector<8x512xf32> to vector<8x128xf32>
    %55 = math.tanh %54 : vector<8x128xf32>
    %56 = vector.extract_strided_slice %41 {offsets = [0, 384], sizes = [8, 128], strides = [1, 1]} : vector<8x512xf32> to vector<8x128xf32>
    %57 = arith.negf %56 : vector<8x128xf32>
    %58 = math.exp %57 : vector<8x128xf32>
    %cst_23 = arith.constant 1.000000e+00 : f32
    %59 = vector.broadcast %cst_23 : f32 to vector<8x128xf32>
    %60 = arith.addf %59, %58 : vector<8x128xf32>
    %61 = arith.divf %59, %60 : vector<8x128xf32>
    %62 = arith.mulf %53, %35 : vector<8x128xf32>
    %63 = arith.mulf %47, %55 : vector<8x128xf32>
    %64 = arith.addf %62, %63 : vector<8x128xf32>
    %65 = math.tanh %64 : vector<8x128xf32>
    %66 = arith.mulf %61, %65 : vector<8x128xf32>
    %c16 = arith.constant 16 : index
    %c0_24 = arith.constant 0 : index
    %67 = vector.load %arg7[%c16, %c0_24] : memref<64x512xf32, #tpu.memory_space<vmem>>, vector<8x512xf32>
    %c0_25 = arith.constant 0 : index
    %c0_26 = arith.constant 0 : index
    %68 = vector.load %arg2[%c0_25, %c0_26] : memref<128x512xf32, #tpu.memory_space<vmem>>, vector<128x512xf32>
    %cst_27 = arith.constant dense<0.000000e+00> : vector<8x512xf32>
    %69 = tpu.matmul %66, %68, %cst_27 {dimension_numbers = #tpu.dot_dimension_numbers<[1], [0], [0], [1], [0, 0, 1, 1], [], []>} : vector<8x128xf32>, vector<128x512xf32>, vector<8x512xf32> -> vector<8x512xf32>
    %70 = arith.addf %67, %69 : vector<8x512xf32>
    %71 = vector.extract_strided_slice %70 {offsets = [0, 0], sizes = [8, 128], strides = [1, 1]} : vector<8x512xf32> to vector<8x128xf32>
    %72 = arith.negf %71 : vector<8x128xf32>
    %73 = math.exp %72 : vector<8x128xf32>
    %cst_28 = arith.constant 1.000000e+00 : f32
    %74 = vector.broadcast %cst_28 : f32 to vector<8x128xf32>
    %75 = arith.addf %74, %73 : vector<8x128xf32>
    %76 = arith.divf %74, %75 : vector<8x128xf32>
    %77 = vector.extract_strided_slice %70 {offsets = [0, 128], sizes = [8, 128], strides = [1, 1]} : vector<8x512xf32> to vector<8x128xf32>
    %78 = arith.negf %77 : vector<8x128xf32>
    %79 = math.exp %78 : vector<8x128xf32>
    %cst_29 = arith.constant 1.000000e+00 : f32
    %80 = vector.broadcast %cst_29 : f32 to vector<8x128xf32>
    %81 = arith.addf %80, %79 : vector<8x128xf32>
    %82 = arith.divf %80, %81 : vector<8x128xf32>
    %83 = vector.extract_strided_slice %70 {offsets = [0, 256], sizes = [8, 128], strides = [1, 1]} : vector<8x512xf32> to vector<8x128xf32>
    %84 = math.tanh %83 : vector<8x128xf32>
    %85 = vector.extract_strided_slice %70 {offsets = [0, 384], sizes = [8, 128], strides = [1, 1]} : vector<8x512xf32> to vector<8x128xf32>
    %86 = arith.negf %85 : vector<8x128xf32>
    %87 = math.exp %86 : vector<8x128xf32>
    %cst_30 = arith.constant 1.000000e+00 : f32
    %88 = vector.broadcast %cst_30 : f32 to vector<8x128xf32>
    %89 = arith.addf %88, %87 : vector<8x128xf32>
    %90 = arith.divf %88, %89 : vector<8x128xf32>
    %91 = arith.mulf %82, %64 : vector<8x128xf32>
    %92 = arith.mulf %76, %84 : vector<8x128xf32>
    %93 = arith.addf %91, %92 : vector<8x128xf32>
    %94 = math.tanh %93 : vector<8x128xf32>
    %95 = arith.mulf %90, %94 : vector<8x128xf32>
    %c24 = arith.constant 24 : index
    %c0_31 = arith.constant 0 : index
    %96 = vector.load %arg7[%c24, %c0_31] : memref<64x512xf32, #tpu.memory_space<vmem>>, vector<8x512xf32>
    %c0_32 = arith.constant 0 : index
    %c0_33 = arith.constant 0 : index
    %97 = vector.load %arg2[%c0_32, %c0_33] : memref<128x512xf32, #tpu.memory_space<vmem>>, vector<128x512xf32>
    %cst_34 = arith.constant dense<0.000000e+00> : vector<8x512xf32>
    %98 = tpu.matmul %95, %97, %cst_34 {dimension_numbers = #tpu.dot_dimension_numbers<[1], [0], [0], [1], [0, 0, 1, 1], [], []>} : vector<8x128xf32>, vector<128x512xf32>, vector<8x512xf32> -> vector<8x512xf32>
    %99 = arith.addf %96, %98 : vector<8x512xf32>
    %100 = vector.extract_strided_slice %99 {offsets = [0, 0], sizes = [8, 128], strides = [1, 1]} : vector<8x512xf32> to vector<8x128xf32>
    %101 = arith.negf %100 : vector<8x128xf32>
    %102 = math.exp %101 : vector<8x128xf32>
    %cst_35 = arith.constant 1.000000e+00 : f32
    %103 = vector.broadcast %cst_35 : f32 to vector<8x128xf32>
    %104 = arith.addf %103, %102 : vector<8x128xf32>
    %105 = arith.divf %103, %104 : vector<8x128xf32>
    %106 = vector.extract_strided_slice %99 {offsets = [0, 128], sizes = [8, 128], strides = [1, 1]} : vector<8x512xf32> to vector<8x128xf32>
    %107 = arith.negf %106 : vector<8x128xf32>
    %108 = math.exp %107 : vector<8x128xf32>
    %cst_36 = arith.constant 1.000000e+00 : f32
    %109 = vector.broadcast %cst_36 : f32 to vector<8x128xf32>
    %110 = arith.addf %109, %108 : vector<8x128xf32>
    %111 = arith.divf %109, %110 : vector<8x128xf32>
    %112 = vector.extract_strided_slice %99 {offsets = [0, 256], sizes = [8, 128], strides = [1, 1]} : vector<8x512xf32> to vector<8x128xf32>
    %113 = math.tanh %112 : vector<8x128xf32>
    %114 = vector.extract_strided_slice %99 {offsets = [0, 384], sizes = [8, 128], strides = [1, 1]} : vector<8x512xf32> to vector<8x128xf32>
    %115 = arith.negf %114 : vector<8x128xf32>
    %116 = math.exp %115 : vector<8x128xf32>
    %cst_37 = arith.constant 1.000000e+00 : f32
    %117 = vector.broadcast %cst_37 : f32 to vector<8x128xf32>
    %118 = arith.addf %117, %116 : vector<8x128xf32>
    %119 = arith.divf %117, %118 : vector<8x128xf32>
    %120 = arith.mulf %111, %93 : vector<8x128xf32>
    %121 = arith.mulf %105, %113 : vector<8x128xf32>
    %122 = arith.addf %120, %121 : vector<8x128xf32>
    %123 = math.tanh %122 : vector<8x128xf32>
    %124 = arith.mulf %119, %123 : vector<8x128xf32>
    %c32 = arith.constant 32 : index
    %c0_38 = arith.constant 0 : index
    %125 = vector.load %arg7[%c32, %c0_38] : memref<64x512xf32, #tpu.memory_space<vmem>>, vector<8x512xf32>
    %c0_39 = arith.constant 0 : index
    %c0_40 = arith.constant 0 : index
    %126 = vector.load %arg2[%c0_39, %c0_40] : memref<128x512xf32, #tpu.memory_space<vmem>>, vector<128x512xf32>
    %cst_41 = arith.constant dense<0.000000e+00> : vector<8x512xf32>
    %127 = tpu.matmul %124, %126, %cst_41 {dimension_numbers = #tpu.dot_dimension_numbers<[1], [0], [0], [1], [0, 0, 1, 1], [], []>} : vector<8x128xf32>, vector<128x512xf32>, vector<8x512xf32> -> vector<8x512xf32>
    %128 = arith.addf %125, %127 : vector<8x512xf32>
    %129 = vector.extract_strided_slice %128 {offsets = [0, 0], sizes = [8, 128], strides = [1, 1]} : vector<8x512xf32> to vector<8x128xf32>
    %130 = arith.negf %129 : vector<8x128xf32>
    %131 = math.exp %130 : vector<8x128xf32>
    %cst_42 = arith.constant 1.000000e+00 : f32
    %132 = vector.broadcast %cst_42 : f32 to vector<8x128xf32>
    %133 = arith.addf %132, %131 : vector<8x128xf32>
    %134 = arith.divf %132, %133 : vector<8x128xf32>
    %135 = vector.extract_strided_slice %128 {offsets = [0, 128], sizes = [8, 128], strides = [1, 1]} : vector<8x512xf32> to vector<8x128xf32>
    %136 = arith.negf %135 : vector<8x128xf32>
    %137 = math.exp %136 : vector<8x128xf32>
    %cst_43 = arith.constant 1.000000e+00 : f32
    %138 = vector.broadcast %cst_43 : f32 to vector<8x128xf32>
    %139 = arith.addf %138, %137 : vector<8x128xf32>
    %140 = arith.divf %138, %139 : vector<8x128xf32>
    %141 = vector.extract_strided_slice %128 {offsets = [0, 256], sizes = [8, 128], strides = [1, 1]} : vector<8x512xf32> to vector<8x128xf32>
    %142 = math.tanh %141 : vector<8x128xf32>
    %143 = vector.extract_strided_slice %128 {offsets = [0, 384], sizes = [8, 128], strides = [1, 1]} : vector<8x512xf32> to vector<8x128xf32>
    %144 = arith.negf %143 : vector<8x128xf32>
    %145 = math.exp %144 : vector<8x128xf32>
    %cst_44 = arith.constant 1.000000e+00 : f32
    %146 = vector.broadcast %cst_44 : f32 to vector<8x128xf32>
    %147 = arith.addf %146, %145 : vector<8x128xf32>
    %148 = arith.divf %146, %147 : vector<8x128xf32>
    %149 = arith.mulf %140, %122 : vector<8x128xf32>
    %150 = arith.mulf %134, %142 : vector<8x128xf32>
    %151 = arith.addf %149, %150 : vector<8x128xf32>
    %152 = math.tanh %151 : vector<8x128xf32>
    %153 = arith.mulf %148, %152 : vector<8x128xf32>
    %c40 = arith.constant 40 : index
    %c0_45 = arith.constant 0 : index
    %154 = vector.load %arg7[%c40, %c0_45] : memref<64x512xf32, #tpu.memory_space<vmem>>, vector<8x512xf32>
    %c0_46 = arith.constant 0 : index
    %c0_47 = arith.constant 0 : index
    %155 = vector.load %arg2[%c0_46, %c0_47] : memref<128x512xf32, #tpu.memory_space<vmem>>, vector<128x512xf32>
    %cst_48 = arith.constant dense<0.000000e+00> : vector<8x512xf32>
    %156 = tpu.matmul %153, %155, %cst_48 {dimension_numbers = #tpu.dot_dimension_numbers<[1], [0], [0], [1], [0, 0, 1, 1], [], []>} : vector<8x128xf32>, vector<128x512xf32>, vector<8x512xf32> -> vector<8x512xf32>
    %157 = arith.addf %154, %156 : vector<8x512xf32>
    %158 = vector.extract_strided_slice %157 {offsets = [0, 0], sizes = [8, 128], strides = [1, 1]} : vector<8x512xf32> to vector<8x128xf32>
    %159 = arith.negf %158 : vector<8x128xf32>
    %160 = math.exp %159 : vector<8x128xf32>
    %cst_49 = arith.constant 1.000000e+00 : f32
    %161 = vector.broadcast %cst_49 : f32 to vector<8x128xf32>
    %162 = arith.addf %161, %160 : vector<8x128xf32>
    %163 = arith.divf %161, %162 : vector<8x128xf32>
    %164 = vector.extract_strided_slice %157 {offsets = [0, 128], sizes = [8, 128], strides = [1, 1]} : vector<8x512xf32> to vector<8x128xf32>
    %165 = arith.negf %164 : vector<8x128xf32>
    %166 = math.exp %165 : vector<8x128xf32>
    %cst_50 = arith.constant 1.000000e+00 : f32
    %167 = vector.broadcast %cst_50 : f32 to vector<8x128xf32>
    %168 = arith.addf %167, %166 : vector<8x128xf32>
    %169 = arith.divf %167, %168 : vector<8x128xf32>
    %170 = vector.extract_strided_slice %157 {offsets = [0, 256], sizes = [8, 128], strides = [1, 1]} : vector<8x512xf32> to vector<8x128xf32>
    %171 = math.tanh %170 : vector<8x128xf32>
    %172 = vector.extract_strided_slice %157 {offsets = [0, 384], sizes = [8, 128], strides = [1, 1]} : vector<8x512xf32> to vector<8x128xf32>
    %173 = arith.negf %172 : vector<8x128xf32>
    %174 = math.exp %173 : vector<8x128xf32>
    %cst_51 = arith.constant 1.000000e+00 : f32
    %175 = vector.broadcast %cst_51 : f32 to vector<8x128xf32>
    %176 = arith.addf %175, %174 : vector<8x128xf32>
    %177 = arith.divf %175, %176 : vector<8x128xf32>
    %178 = arith.mulf %169, %151 : vector<8x128xf32>
    %179 = arith.mulf %163, %171 : vector<8x128xf32>
    %180 = arith.addf %178, %179 : vector<8x128xf32>
    %181 = math.tanh %180 : vector<8x128xf32>
    %182 = arith.mulf %177, %181 : vector<8x128xf32>
    %c48 = arith.constant 48 : index
    %c0_52 = arith.constant 0 : index
    %183 = vector.load %arg7[%c48, %c0_52] : memref<64x512xf32, #tpu.memory_space<vmem>>, vector<8x512xf32>
    %c0_53 = arith.constant 0 : index
    %c0_54 = arith.constant 0 : index
    %184 = vector.load %arg2[%c0_53, %c0_54] : memref<128x512xf32, #tpu.memory_space<vmem>>, vector<128x512xf32>
    %cst_55 = arith.constant dense<0.000000e+00> : vector<8x512xf32>
    %185 = tpu.matmul %182, %184, %cst_55 {dimension_numbers = #tpu.dot_dimension_numbers<[1], [0], [0], [1], [0, 0, 1, 1], [], []>} : vector<8x128xf32>, vector<128x512xf32>, vector<8x512xf32> -> vector<8x512xf32>
    %186 = arith.addf %183, %185 : vector<8x512xf32>
    %187 = vector.extract_strided_slice %186 {offsets = [0, 0], sizes = [8, 128], strides = [1, 1]} : vector<8x512xf32> to vector<8x128xf32>
    %188 = arith.negf %187 : vector<8x128xf32>
    %189 = math.exp %188 : vector<8x128xf32>
    %cst_56 = arith.constant 1.000000e+00 : f32
    %190 = vector.broadcast %cst_56 : f32 to vector<8x128xf32>
    %191 = arith.addf %190, %189 : vector<8x128xf32>
    %192 = arith.divf %190, %191 : vector<8x128xf32>
    %193 = vector.extract_strided_slice %186 {offsets = [0, 128], sizes = [8, 128], strides = [1, 1]} : vector<8x512xf32> to vector<8x128xf32>
    %194 = arith.negf %193 : vector<8x128xf32>
    %195 = math.exp %194 : vector<8x128xf32>
    %cst_57 = arith.constant 1.000000e+00 : f32
    %196 = vector.broadcast %cst_57 : f32 to vector<8x128xf32>
    %197 = arith.addf %196, %195 : vector<8x128xf32>
    %198 = arith.divf %196, %197 : vector<8x128xf32>
    %199 = vector.extract_strided_slice %186 {offsets = [0, 256], sizes = [8, 128], strides = [1, 1]} : vector<8x512xf32> to vector<8x128xf32>
    %200 = math.tanh %199 : vector<8x128xf32>
    %201 = vector.extract_strided_slice %186 {offsets = [0, 384], sizes = [8, 128], strides = [1, 1]} : vector<8x512xf32> to vector<8x128xf32>
    %202 = arith.negf %201 : vector<8x128xf32>
    %203 = math.exp %202 : vector<8x128xf32>
    %cst_58 = arith.constant 1.000000e+00 : f32
    %204 = vector.broadcast %cst_58 : f32 to vector<8x128xf32>
    %205 = arith.addf %204, %203 : vector<8x128xf32>
    %206 = arith.divf %204, %205 : vector<8x128xf32>
    %207 = arith.mulf %198, %180 : vector<8x128xf32>
    %208 = arith.mulf %192, %200 : vector<8x128xf32>
    %209 = arith.addf %207, %208 : vector<8x128xf32>
    %210 = math.tanh %209 : vector<8x128xf32>
    %211 = arith.mulf %206, %210 : vector<8x128xf32>
    %c56 = arith.constant 56 : index
    %c0_59 = arith.constant 0 : index
    %212 = vector.load %arg7[%c56, %c0_59] : memref<64x512xf32, #tpu.memory_space<vmem>>, vector<8x512xf32>
    %c0_60 = arith.constant 0 : index
    %c0_61 = arith.constant 0 : index
    %213 = vector.load %arg2[%c0_60, %c0_61] : memref<128x512xf32, #tpu.memory_space<vmem>>, vector<128x512xf32>
    %cst_62 = arith.constant dense<0.000000e+00> : vector<8x512xf32>
    %214 = tpu.matmul %211, %213, %cst_62 {dimension_numbers = #tpu.dot_dimension_numbers<[1], [0], [0], [1], [0, 0, 1, 1], [], []>} : vector<8x128xf32>, vector<128x512xf32>, vector<8x512xf32> -> vector<8x512xf32>
    %215 = arith.addf %212, %214 : vector<8x512xf32>
    %216 = vector.extract_strided_slice %215 {offsets = [0, 0], sizes = [8, 128], strides = [1, 1]} : vector<8x512xf32> to vector<8x128xf32>
    %217 = arith.negf %216 : vector<8x128xf32>
    %218 = math.exp %217 : vector<8x128xf32>
    %cst_63 = arith.constant 1.000000e+00 : f32
    %219 = vector.broadcast %cst_63 : f32 to vector<8x128xf32>
    %220 = arith.addf %219, %218 : vector<8x128xf32>
    %221 = arith.divf %219, %220 : vector<8x128xf32>
    %222 = vector.extract_strided_slice %215 {offsets = [0, 128], sizes = [8, 128], strides = [1, 1]} : vector<8x512xf32> to vector<8x128xf32>
    %223 = arith.negf %222 : vector<8x128xf32>
    %224 = math.exp %223 : vector<8x128xf32>
    %cst_64 = arith.constant 1.000000e+00 : f32
    %225 = vector.broadcast %cst_64 : f32 to vector<8x128xf32>
    %226 = arith.addf %225, %224 : vector<8x128xf32>
    %227 = arith.divf %225, %226 : vector<8x128xf32>
    %228 = vector.extract_strided_slice %215 {offsets = [0, 256], sizes = [8, 128], strides = [1, 1]} : vector<8x512xf32> to vector<8x128xf32>
    %229 = math.tanh %228 : vector<8x128xf32>
    %230 = vector.extract_strided_slice %215 {offsets = [0, 384], sizes = [8, 128], strides = [1, 1]} : vector<8x512xf32> to vector<8x128xf32>
    %231 = arith.negf %230 : vector<8x128xf32>
    %232 = math.exp %231 : vector<8x128xf32>
    %cst_65 = arith.constant 1.000000e+00 : f32
    %233 = vector.broadcast %cst_65 : f32 to vector<8x128xf32>
    %234 = arith.addf %233, %232 : vector<8x128xf32>
    %235 = arith.divf %233, %234 : vector<8x128xf32>
    %236 = arith.mulf %227, %209 : vector<8x128xf32>
    %237 = arith.mulf %221, %229 : vector<8x128xf32>
    %238 = arith.addf %236, %237 : vector<8x128xf32>
    %239 = math.tanh %238 : vector<8x128xf32>
    %240 = arith.mulf %235, %239 : vector<8x128xf32>
    %c0_66 = arith.constant 0 : index
    %c0_67 = arith.constant 0 : index
    %241 = vector.load %arg4[%c0_66, %c0_67] : memref<128x128xf32, #tpu.memory_space<vmem>>, vector<128x128xf32>
    %cst_68 = arith.constant dense<0.000000e+00> : vector<8x128xf32>
    %242 = tpu.matmul %240, %241, %cst_68 {dimension_numbers = #tpu.dot_dimension_numbers<[1], [0], [0], [1], [0, 0, 1, 1], [], []>} : vector<8x128xf32>, vector<128x128xf32>, vector<8x128xf32> -> vector<8x128xf32>
    %c0_69 = arith.constant 0 : index
    %c0_70 = arith.constant 0 : index
    %243 = vector.load %arg5[%c0_69, %c0_70] : memref<1x128xf32, #tpu.memory_space<vmem>>, vector<1x128xf32>
    %244 = vector.broadcast %243 : vector<1x128xf32> to vector<8x128xf32>
    %245 = arith.addf %242, %244 : vector<8x128xf32>
    %c0_71 = arith.constant 0 : index
    %c0_72 = arith.constant 0 : index
    %246 = vector.load %arg6[%c0_71, %c0_72] : memref<8x128xf32, #tpu.memory_space<vmem>>, vector<8x128xf32>
    tpu.vector_store %arg6[%c0_71, %c0_72], %245 {strides = array<i32>} : memref<8x128xf32, #tpu.memory_space<vmem>>, vector<8x128xf32>,
    return
  }
}

</mosaic_0001>

<llo_original>
// kernel: tpu_custom_call.1
$region0: #{tpu_custom_call.1}
  #allocation0 [shape = 'u32[]', space=smem, size = 0x4, offset = 0x4, fixed_abs, tag = 'smem constant byte address 0x4 - core index']
  #allocation1 [shape = 'u32[144,128]{1,0:T(1,128)}', space=vmem, size = 0x12000, scoped, tag = 'internal scratch']
  #allocation2 [shape = 'f32[64,512]{1,0:T(8,128)}', space=vmem, size = 0x20000, scoped, tag = 'scratch operand']
  %s0 = inlined_call_operand.hbm [shape: f32[64,128], index: 0, kind: input, shape index: {}]
  %s1 = inlined_call_operand.hbm [shape: f32[128,512], index: 1, kind: input, shape index: {}]
  %s2 = inlined_call_operand.hbm [shape: f32[128,512], index: 2, kind: input, shape index: {}]
  %s3 = inlined_call_operand.vmem [shape: f32[1,512], index: 3, kind: input, shape index: {}]
  %s4 = inlined_call_operand.hbm [shape: f32[128,128], index: 4, kind: input, shape index: {}]
  %s5 = inlined_call_operand.vmem [shape: f32[1,128], index: 5, kind: input, shape index: {}]
  %s6 = inlined_call_operand.hbm [shape: f32[8,128], index: 6, kind: output, shape index: {}]
  %s7 = sld [smem:[#allocation0]]
  $region50: #{tpu_custom_call.1} parent=0
    _
  %s9 = ssub.s32 1, %s7
  %s10 = scalar_select 0, %s9, %s7
  $region1: #{tpu_custom_call.1} parent=0
    #allocation3 [shape = 'u8[32768]{0}', space=vmem, size = 0x8000, scoped, tag = 'input window, operand 0, single buffered']
    #allocation4 [shape = 's32[1]{0}', space=sflag, size = 0x4, scoped, tag = 'scoped memory for tpu_custom_call.1']
    #allocation5 [shape = 's32[1]{0}', space=sflag, size = 0x4, scoped, tag = 'scoped memory for tpu_custom_call.1']
    #allocation6 [shape = 'u8[262144]{0}', space=vmem, size = 0x40000, scoped, tag = 'input window, operand 1, single buffered']
    #allocation7 [shape = 's32[1]{0}', space=sflag, size = 0x4, scoped, tag = 'scoped memory for tpu_custom_call.1']
    #allocation8 [shape = 'u8[262144]{0}', space=vmem, size = 0x40000, scoped, tag = 'input window, operand 2, single buffered']
    #allocation9 [shape = 'u8[65536]{0}', space=vmem, size = 0x10000, scoped, tag = 'input window, operand 4, single buffered']
    #allocation10 [shape = 's32[1]{0}', space=sflag, size = 0x4, scoped, tag = 'scoped memory for tpu_custom_call.1']
    #allocation11 [shape = 'u8[4096]{0}', space=vmem, size = 0x1000, scoped, tag = 'output window, operand 0, single buffered']
    %11 = vsyncpa [#allocation4], 0
    %12 = vsyncpa [#allocation7], 0
    %13 = vsyncpa [#allocation10], 0
    %14 = vsyncpa [#allocation5], 0
    // Predicated region
    $region2: #{tpu_custom_call.1} parent=1 // pred_check
      _
    $region3: #{tpu_custom_call.1} parent=1 // pred_check_branch
      %16 = sbr.rel (0) target = $region5
    $region4: #{tpu_custom_call.1} parent=1 // pred_region
      %s18 = ssub.s32 1024, 1024
      %19 = vsyncadd [#allocation4], %s18
      %s20 = sshll.u32 [#allocation3], 4
      %s21 = int_to_ptr.vmem [resolvable:$true] %s20
      %26 = dma.hbm_to_vmem [thread:$0]  %s0, 1024, %s21, [#allocation4], 128, 128, 8
    $region5: #{tpu_custom_call.1} parent=1 // pred_fallthru
      _
    // Predicated region
    $region6: #{tpu_custom_call.1} parent=1 // pred_check
      _
    $region7: #{tpu_custom_call.1} parent=1 // pred_check_branch
      %28 = sbr.rel (0) target = $region9
    $region8: #{tpu_custom_call.1} parent=1 // pred_region
      %s30 = ssub.s32 8192, 8192
      %31 = vsyncadd [#allocation7], %s30
      %s32 = sshll.u32 [#allocation6], 4
      %s33 = int_to_ptr.vmem [resolvable:$true] %s32
      %38 = dma.hbm_to_vmem [thread:$0]  %s1, 8192, %s33, [#allocation7], 512, 512, 32
    $region9: #{tpu_custom_call.1} parent=1 // pred_fallthru
      _
    // Predicated region
    $region10: #{tpu_custom_call.1} parent=1 // pred_check
      _
    $region11: #{tpu_custom_call.1} parent=1 // pred_check_branch
      %40 = sbr.rel (0) target = $region13
    $region12: #{tpu_custom_call.1} parent=1 // pred_region
      %s42 = ssub.s32 8192, 8192
      %43 = vsyncadd [#allocation7], %s42
      %s44 = sshll.u32 [#allocation8], 4
      %s45 = int_to_ptr.vmem [resolvable:$true] %s44
      %50 = dma.hbm_to_vmem [thread:$0]  %s2, 8192, %s45, [#allocation7], 512, 512, 32
    $region13: #{tpu_custom_call.1} parent=1 // pred_fallthru
      _
    // Predicated region
    $region14: #{tpu_custom_call.1} parent=1 // pred_check
      _
    $region15: #{tpu_custom_call.1} parent=1 // pred_check_branch
      %52 = sbr.rel (0) target = $region17
    $region16: #{tpu_custom_call.1} parent=1 // pred_region
      _
    $region17: #{tpu_custom_call.1} parent=1 // pred_fallthru
      _
    // Predicated region
    $region18: #{tpu_custom_call.1} parent=1 // pred_check
      _
    $region19: #{tpu_custom_call.1} parent=1 // pred_check_branch
      %54 = sbr.rel (0) target = $region21
    $region20: #{tpu_custom_call.1} parent=1 // pred_region
      %s56 = ssub.s32 2048, 2048
      %57 = vsyncadd [#allocation10], %s56
      %s58 = sshll.u32 [#allocation9], 4
      %s59 = int_to_ptr.vmem [resolvable:$true] %s58
      %64 = dma.hbm_to_vmem [thread:$0]  %s4, 2048, %s59, [#allocation10], 128, 128, 8
    $region21: #{tpu_custom_call.1} parent=1 // pred_fallthru
      _
    // Predicated region
    $region22: #{tpu_custom_call.1} parent=1 // pred_check
      _
    $region23: #{tpu_custom_call.1} parent=1 // pred_check_branch
      %66 = sbr.rel (0) target = $region25
    $region24: #{tpu_custom_call.1} parent=1 // pred_region
      _
    $region25: #{tpu_custom_call.1} parent=1 // pred_fallthru
      _
    // Predicated region
    $region26: #{tpu_custom_call.1} parent=1 // pred_check
      _
    $region27: #{tpu_custom_call.1} parent=1 // pred_check_branch
      %68 = sbr.rel (0) target = $region29
    $region28: #{tpu_custom_call.1} parent=1 // pred_region
      %69 = dma.done [#allocation4], 1024
    $region29: #{tpu_custom_call.1} parent=1 // pred_fallthru
      _
    // Predicated region
    $region30: #{tpu_custom_call.1} parent=1 // pred_check
      _
    $region31: #{tpu_custom_call.1} parent=1 // pred_check_branch
      %71 = sbr.rel (0) target = $region33
    $region32: #{tpu_custom_call.1} parent=1 // pred_region
      %72 = dma.done [#allocation7], 8192
    $region33: #{tpu_custom_call.1} parent=1 // pred_fallthru
      _
    // Predicated region
    $region34: #{tpu_custom_call.1} parent=1 // pred_check
      _
    $region35: #{tpu_custom_call.1} parent=1 // pred_check_branch
      %74 = sbr.rel (0) target = $region37
    $region36: #{tpu_custom_call.1} parent=1 // pred_region
      %75 = dma.done [#allocation7], 8192
    $region37: #{tpu_custom_call.1} parent=1 // pred_fallthru
      _
    // Predicated region
    $region38: #{tpu_custom_call.1} parent=1 // pred_check
      _
    $region39: #{tpu_custom_call.1} parent=1 // pred_check_branch
      %77 = sbr.rel (0) target = $region41
    $region40: #{tpu_custom_call.1} parent=1 // pred_region
      %78 = dma.done [#allocation10], 2048
    $region41: #{tpu_custom_call.1} parent=1 // pred_fallthru
      _
    %v79 = vld [vmem:[#allocation3] sm:$0xff]
    %v80 = vld [vmem:[#allocation3 + $0x8] sm:$0xff]
    %v81 = vld [vmem:[#allocation3 + $0x10] sm:$0xff]
    %v82 = vld [vmem:[#allocation3 + $0x18] sm:$0xff]
    %v83 = vld [vmem:[#allocation3 + $0x20] sm:$0xff]
    %v84 = vld [vmem:[#allocation3 + $0x28] sm:$0xff]
    %v85 = vld [vmem:[#allocation3 + $0x30] sm:$0xff]
    %v86 = vld [vmem:[#allocation3 + $0x38] sm:$0xff]
    %v87 = vld [vmem:[#allocation6] sm:$0xff]
    %v88 = vld [vmem:[#allocation6 + $0x8] sm:$0xff]
    %v89 = vld [vmem:[#allocation6 + $0x10] sm:$0xff]
    %v90 = vld [vmem:[#allocation6 + $0x18] sm:$0xff]
    %v91 = vld [vmem:[#allocation6 + $0x20] sm:$0xff]
    %v92 = vld [vmem:[#allocation6 + $0x28] sm:$0xff]
    %v93 = vld [vmem:[#allocation6 + $0x30] sm:$0xff]
    %v94 = vld [vmem:[#allocation6 + $0x38] sm:$0xff]
    %v95 = vld [vmem:[#allocation6 + $0x40] sm:$0xff]
    %v96 = vld [vmem:[#allocation6 + $0x48] sm:$0xff]
    %v97 = vld [vmem:[#allocation6 + $0x50] sm:$0xff]
    %v98 = vld [vmem:[#allocation6 + $0x58] sm:$0xff]
    %v99 = vld [vmem:[#allocation6 + $0x60] sm:$0xff]
    %v100 = vld [vmem:[#allocation6 + $0x68] sm:$0xff]
    %v101 = vld [vmem:[#allocation6 + $0x70] sm:$0xff]
    %v102 = vld [vmem:[#allocation6 + $0x78] sm:$0xff]
    %v103 = vld [vmem:[#allocation6 + $0x80] sm:$0xff]
    %v104 = vld [vmem:[#allocation6 + $0x88] sm:$0xff]
    %v105 = vld [vmem:[#allocation6 + $0x90] sm:$0xff]
    %v106 = vld [vmem:[#allocation6 + $0x98] sm:$0xff]
    %v107 = vld [vmem:[#allocation6 + $0xa0] sm:$0xff]
    %v108 = vld [vmem:[#allocation6 + $0xa8] sm:$0xff]
    %v109 = vld [vmem:[#allocation6 + $0xb0] sm:$0xff]
    %v110 = vld [vmem:[#allocation6 + $0xb8] sm:$0xff]
    %v111 = vld [vmem:[#allocation6 + $0xc0] sm:$0xff]
    %v112 = vld [vmem:[#allocation6 + $0xc8] sm:$0xff]
    %v113 = vld [vmem:[#allocation6 + $0xd0] sm:$0xff]
    %v114 = vld [vmem:[#allocation6 + $0xd8] sm:$0xff]
    %v115 = vld [vmem:[#allocation6 + $0xe0] sm:$0xff]
    %v116 = vld [vmem:[#allocation6 + $0xe8] sm:$0xff]
    %v117 = vld [vmem:[#allocation6 + $0xf0] sm:$0xff]
    %v118 = vld [vmem:[#allocation6 + $0xf8] sm:$0xff]
    %v119 = vld [vmem:[#allocation6 + $0x100] sm:$0xff]
    %v120 = vld [vmem:[#allocation6 + $0x108] sm:$0xff]
    %v121 = vld [vmem:[#allocation6 + $0x110] sm:$0xff]
    %v122 = vld [vmem:[#allocation6 + $0x118] sm:$0xff]
    %v123 = vld [vmem:[#allocation6 + $0x120] sm:$0xff]
    %v124 = vld [vmem:[#allocation6 + $0x128] sm:$0xff]
    %v125 = vld [vmem:[#allocation6 + $0x130] sm:$0xff]
    %v126 = vld [vmem:[#allocation6 + $0x138] sm:$0xff]
    %v127 = vld [vmem:[#allocation6 + $0x140] sm:$0xff]
    %v128 = vld [vmem:[#allocation6 + $0x148] sm:$0xff]
    %v129 = vld [vmem:[#allocation6 + $0x150] sm:$0xff]
    %v130 = vld [vmem:[#allocation6 + $0x158] sm:$0xff]
    %v131 = vld [vmem:[#allocation6 + $0x160] sm:$0xff]
    %v132 = vld [vmem:[#allocation6 + $0x168] sm:$0xff]
    %v133 = vld [vmem:[#allocation6 + $0x170] sm:$0xff]
    %v134 = vld [vmem:[#allocation6 + $0x178] sm:$0xff]
    %v135 = vld [vmem:[#allocation6 + $0x180] sm:$0xff]
    %v136 = vld [vmem:[#allocation6 + $0x188] sm:$0xff]
    %v137 = vld [vmem:[#allocation6 + $0x190] sm:$0xff]
    %v138 = vld [vmem:[#allocation6 + $0x198] sm:$0xff]
    %v139 = vld [vmem:[#allocation6 + $0x1a0] sm:$0xff]
    %v140 = vld [vmem:[#allocation6 + $0x1a8] sm:$0xff]
    %v141 = vld [vmem:[#allocation6 + $0x1b0] sm:$0xff]
    %v142 = vld [vmem:[#allocation6 + $0x1b8] sm:$0xff]
    %v143 = vld [vmem:[#allocation6 + $0x1c0] sm:$0xff]
    %v144 = vld [vmem:[#allocation6 + $0x1c8] sm:$0xff]
    %v145 = vld [vmem:[#allocation6 + $0x1d0] sm:$0xff]
    %v146 = vld [vmem:[#allocation6 + $0x1d8] sm:$0xff]
    %v147 = vld [vmem:[#allocation6 + $0x1e0] sm:$0xff]
    %v148 = vld [vmem:[#allocation6 + $0x1e8] sm:$0xff]
    %v149 = vld [vmem:[#allocation6 + $0x1f0] sm:$0xff]
    %v150 = vld [vmem:[#allocation6 + $0x1f8] sm:$0xff]
    %v151 = vld [vmem:[%s3] sm:$0xf]
    %v153 = vlaneseq
    %v154 = vshrl.u32 %v153, 7
    %v155 = vsub.s32 0, %v154
    %v156 = vrot.slane %v151, %v155
    %v157 = vlaneseq
    %v158 = vshrl.u32 %v157, 7
    %v159 = vsub.s32 1, %v158
    %v160 = vrot.slane %v151, %v159
    %v161 = vlaneseq
    %v162 = vshrl.u32 %v161, 7
    %v163 = vsub.s32 2, %v162
    %v164 = vrot.slane %v151, %v163
    %v165 = vlaneseq
    %v166 = vshrl.u32 %v165, 7
    %v167 = vsub.s32 3, %v166
    %v168 = vrot.slane %v151, %v167
    %173 = vmatprep.subr.mxu0 %v88
    %174 = vmatpush1.msra.mxu0 %v87
    %175 = vmatprep.subr.mxu0 %v92
    %176 = vmatpush1.msra.mxu0 %v91
    %177 = vmatprep.subr.mxu0 %v96
    %178 = vmatpush1.msra.mxu0 %v95
    %179 = vmatprep.subr.mxu0 %v100
    %180 = vmatpush1.msra.mxu0 %v99
    %181 = vmatprep.subr.mxu0 %v104
    %182 = vmatpush1.msra.mxu0 %v103
    %183 = vmatprep.subr.mxu0 %v108
    %184 = vmatpush1.msra.mxu0 %v107
    %185 = vmatprep.subr.mxu0 %v112
    %186 = vmatpush1.msra.mxu0 %v111
    %187 = vmatprep.subr.mxu0 %v116
    %188 = vmatpush1.msra.mxu0 %v115
    %189 = vmatprep.subr.mxu0 %v120
    %190 = vmatpush1.msra.mxu0 %v119
    %191 = vmatprep.subr.mxu0 %v124
    %192 = vmatpush1.msra.mxu0 %v123
    %193 = vmatprep.subr.mxu0 %v128
    %194 = vmatpush1.msra.mxu0 %v127
    %195 = vmatprep.subr.mxu0 %v132
    %196 = vmatpush1.msra.mxu0 %v131
    %197 = vmatprep.subr.mxu0 %v136
    %198 = vmatpush1.msra.mxu0 %v135
    %199 = vmatprep.subr.mxu0 %v140
    %200 = vmatpush1.msra.mxu0 %v139
    %201 = vmatprep.subr.mxu0 %v144
    %202 = vmatpush1.msra.mxu0 %v143
    %203 = vmatprep.subr.mxu0 %v148
    %204 = vmatpush1.msra.mxu0 %v147
    %205 = vmatprep.subr.mxu0 0.0
    %206 = vmatpush1.msra.mxu0 0.0
    %207 = vmatprep.subr.mxu0 0.0
    %208 = vmatpush1.msra.mxu0 0.0
    %209 = vmatprep.subr.mxu0 0.0
    %210 = vmatpush1.msra.mxu0 0.0
    %211 = vmatprep.subr.mxu0 0.0
    %212 = vmatpush1.msra.mxu0 0.0
    %213 = vmatprep.subr.mxu0 0.0
    %214 = vmatpush1.msra.mxu0 0.0
    %215 = vmatprep.subr.mxu0 0.0
    %216 = vmatpush1.msra.mxu0 0.0
    %217 = vmatprep.subr.mxu0 0.0
    %218 = vmatpush1.msra.mxu0 0.0
    %219 = vmatprep.subr.mxu0 0.0
    %220 = vmatpush1.msra.mxu0 0.0
    %221 = vmatprep.subr.mxu0 0.0
    %222 = vmatpush1.msra.mxu0 0.0
    %223 = vmatprep.subr.mxu0 0.0
    %224 = vmatpush1.msra.mxu0 0.0
    %225 = vmatprep.subr.mxu0 0.0
    %226 = vmatpush1.msra.mxu0 0.0
    %227 = vmatprep.subr.mxu0 0.0
    %228 = vmatpush1.msra.mxu0 0.0
    %229 = vmatprep.subr.mxu0 0.0
    %230 = vmatpush1.msra.mxu0 0.0
    %231 = vmatprep.subr.mxu0 0.0
    %232 = vmatpush1.msra.mxu0 0.0
    %233 = vmatprep.subr.mxu0 0.0
    %234 = vmatpush1.msra.mxu0 0.0
    %235 = vmatprep.subr.mxu0 0.0
    %236 = vmatpush1.msra.mxu0 0.0
    %237 = vmatprep.mubr.f32.mxu0 0.0
    %238 = vmatmul.mubr.f32.gmra.mrb[0].mxu0 %v79
    %v239 = vpop.f32.mrb[0].mxu0
    %v240 = vadd.f32 %v156, %v239
    %v241 = vpop.f32.mrb[0].mxu0
    %v242 = vadd.f32 %v160, %v241
    %243 = vmatprep.mubr.f32.mxu0 0.0
    %244 = vmatmul.mubr.f32.gmra.mrb[0].mxu0 %v80
    %v245 = vpop.f32.mrb[0].mxu0
    %v246 = vadd.f32 %v156, %v245
    %v247 = vpop.f32.mrb[0].mxu0
    %v248 = vadd.f32 %v160, %v247
    %249 = vmatprep.mubr.f32.mxu0 0.0
    %250 = vmatmul.mubr.f32.gmra.mrb[0].mxu0 %v81
    %v251 = vpop.f32.mrb[0].mxu0
    %v252 = vadd.f32 %v156, %v251
    %v253 = vpop.f32.mrb[0].mxu0
    %v254 = vadd.f32 %v160, %v253
    %255 = vmatprep.mubr.f32.mxu0 0.0
    %256 = vmatmul.mubr.f32.gmra.mrb[0].mxu0 %v82
    %v257 = vpop.f32.mrb[0].mxu0
    %v258 = vadd.f32 %v156, %v257
    %v259 = vpop.f32.mrb[0].mxu0
    %v260 = vadd.f32 %v160, %v259
    %261 = vmatprep.mubr.f32.mxu0 0.0
    %262 = vmatmul.mubr.f32.gmra.mrb[0].mxu0 %v83
    %v263 = vpop.f32.mrb[0].mxu0
    %v264 = vadd.f32 %v156, %v263
    %v265 = vpop.f32.mrb[0].mxu0
    %v266 = vadd.f32 %v160, %v265
    %267 = vmatprep.mubr.f32.mxu0 0.0
    %268 = vmatmul.mubr.f32.gmra.mrb[0].mxu0 %v84
    %v269 = vpop.f32.mrb[0].mxu0
    %v270 = vadd.f32 %v156, %v269
    %v271 = vpop.f32.mrb[0].mxu0
    %v272 = vadd.f32 %v160, %v271
    %273 = vmatprep.mubr.f32.mxu0 0.0
    %274 = vmatmul.mubr.f32.gmra.mrb[0].mxu0 %v85
    %v275 = vpop.f32.mrb[0].mxu0
    %v276 = vadd.f32 %v156, %v275
    %v277 = vpop.f32.mrb[0].mxu0
    %v278 = vadd.f32 %v160, %v277
    %279 = vmatprep.mubr.f32.mxu0 0.0
    %280 = vmatmul.mubr.f32.gmra.mrb[0].mxu0 %v86
    %v281 = vpop.f32.mrb[0].mxu0
    %v282 = vadd.f32 %v156, %v281
    %v283 = vpop.f32.mrb[0].mxu0
    %v284 = vadd.f32 %v160, %v283
    %285 = vdwg.mxu0
    %286 = vmatprep.subr.mxu0 %v90
    %287 = vmatpush1.msra.mxu0 %v89
    %288 = vmatprep.subr.mxu0 %v94
    %289 = vmatpush1.msra.mxu0 %v93
    %290 = vmatprep.subr.mxu0 %v98
    %291 = vmatpush1.msra.mxu0 %v97
    %292 = vmatprep.subr.mxu0 %v102
    %293 = vmatpush1.msra.mxu0 %v101
    %294 = vmatprep.subr.mxu0 %v106
    %295 = vmatpush1.msra.mxu0 %v105
    %296 = vmatprep.subr.mxu0 %v110
    %297 = vmatpush1.msra.mxu0 %v109
    %298 = vmatprep.subr.mxu0 %v114
    %299 = vmatpush1.msra.mxu0 %v113
    %300 = vmatprep.subr.mxu0 %v118
    %301 = vmatpush1.msra.mxu0 %v117
    %302 = vmatprep.subr.mxu0 %v122
    %303 = vmatpush1.msra.mxu0 %v121
    %304 = vmatprep.subr.mxu0 %v126
    %305 = vmatpush1.msra.mxu0 %v125
    %306 = vmatprep.subr.mxu0 %v130
    %307 = vmatpush1.msra.mxu0 %v129
    %308 = vmatprep.subr.mxu0 %v134
    %309 = vmatpush1.msra.mxu0 %v133
    %310 = vmatprep.subr.mxu0 %v138
    %311 = vmatpush1.msra.mxu0 %v137
    %312 = vmatprep.subr.mxu0 %v142
    %313 = vmatpush1.msra.mxu0 %v141
    %314 = vmatprep.subr.mxu0 %v146
    %315 = vmatpush1.msra.mxu0 %v145
    %316 = vmatprep.subr.mxu0 %v150
    %317 = vmatpush1.msra.mxu0 %v149
    %318 = vmatprep.subr.mxu0 0.0
    %319 = vmatpush1.msra.mxu0 0.0
    %320 = vmatprep.subr.mxu0 0.0
    %321 = vmatpush1.msra.mxu0 0.0
    %322 = vmatprep.subr.mxu0 0.0
    %323 = vmatpush1.msra.mxu0 0.0
    %324 = vmatprep.subr.mxu0 0.0
    %325 = vmatpush1.msra.mxu0 0.0
    %326 = vmatprep.subr.mxu0 0.0
    %327 = vmatpush1.msra.mxu0 0.0
    %328 = vmatprep.subr.mxu0 0.0
    %329 = vmatpush1.msra.mxu0 0.0
    %330 = vmatprep.subr.mxu0 0.0
    %331 = vmatpush1.msra.mxu0 0.0
    %332 = vmatprep.subr.mxu0 0.0
    %333 = vmatpush1.msra.mxu0 0.0
    %334 = vmatprep.subr.mxu0 0.0
    %335 = vmatpush1.msra.mxu0 0.0
    %336 = vmatprep.subr.mxu0 0.0
    %337 = vmatpush1.msra.mxu0 0.0
    %338 = vmatprep.subr.mxu0 0.0
    %339 = vmatpush1.msra.mxu0 0.0
    %340 = vmatprep.subr.mxu0 0.0
    %341 = vmatpush1.msra.mxu0 0.0
    %342 = vmatprep.subr.mxu0 0.0
    %343 = vmatpush1.msra.mxu0 0.0
    %344 = vmatprep.subr.mxu0 0.0
    %345 = vmatpush1.msra.mxu0 0.0
    %346 = vmatprep.subr.mxu0 0.0
    %347 = vmatpush1.msra.mxu0 0.0
    %348 = vmatprep.subr.mxu0 0.0
    %349 = vmatpush1.msra.mxu0 0.0
    %350 = vmatprep.mubr.f32.mxu0 0.0
    %351 = vmatmul.mubr.f32.gmra.mrb[0].mxu0 %v79
    %v352 = vpop.f32.mrb[0].mxu0
    %v353 = vadd.f32 %v164, %v352
    %v354 = vpop.f32.mrb[0].mxu0
    %v355 = vadd.f32 %v168, %v354
    %356 = vmatprep.mubr.f32.mxu0 0.0
    %357 = vmatmul.mubr.f32.gmra.mrb[0].mxu0 %v80
    %v358 = vpop.f32.mrb[0].mxu0
    %v359 = vadd.f32 %v164, %v358
    %v360 = vpop.f32.mrb[0].mxu0
    %v361 = vadd.f32 %v168, %v360
    %362 = vmatprep.mubr.f32.mxu0 0.0
    %363 = vmatmul.mubr.f32.gmra.mrb[0].mxu0 %v81
    %v364 = vpop.f32.mrb[0].mxu0
    %v365 = vadd.f32 %v164, %v364
    %v366 = vpop.f32.mrb[0].mxu0
    %v367 = vadd.f32 %v168, %v366
    %368 = vmatprep.mubr.f32.mxu0 0.0
    %369 = vmatmul.mubr.f32.gmra.mrb[0].mxu0 %v82
    %v370 = vpop.f32.mrb[0].mxu0
    %v371 = vadd.f32 %v164, %v370
    %v372 = vpop.f32.mrb[0].mxu0
    %v373 = vadd.f32 %v168, %v372
    %374 = vmatprep.mubr.f32.mxu0 0.0
    %375 = vmatmul.mubr.f32.gmra.mrb[0].mxu0 %v83
    %v376 = vpop.f32.mrb[0].mxu0
    %v377 = vadd.f32 %v164, %v376
    %v378 = vpop.f32.mrb[0].mxu0
    %v379 = vadd.f32 %v168, %v378
    %380 = vmatprep.mubr.f32.mxu0 0.0
    %381 = vmatmul.mubr.f32.gmra.mrb[0].mxu0 %v84
    %v382 = vpop.f32.mrb[0].mxu0
    %v383 = vadd.f32 %v164, %v382
    %v384 = vpop.f32.mrb[0].mxu0
    %v385 = vadd.f32 %v168, %v384
    %386 = vmatprep.mubr.f32.mxu0 0.0
    %387 = vmatmul.mubr.f32.gmra.mrb[0].mxu0 %v85
    %v388 = vpop.f32.mrb[0].mxu0
    %v389 = vadd.f32 %v164, %v388
    %v390 = vpop.f32.mrb[0].mxu0
    %v391 = vadd.f32 %v168, %v390
    %392 = vmatprep.mubr.f32.mxu0 0.0
    %393 = vmatmul.mubr.f32.gmra.mrb[0].mxu0 %v86
    %v394 = vpop.f32.mrb[0].mxu0
    %v395 = vadd.f32 %v164, %v394
    %v396 = vpop.f32.mrb[0].mxu0
    %v397 = vadd.f32 %v168, %v396
    %398 = vdwg.mxu0
    %399 = vst [vmem:[#allocation2] sm:$0xff] %v240
    %400 = vst [vmem:[#allocation2 + $0x8] sm:$0xff] %v242
    %401 = vst [vmem:[#allocation2 + $0x10] sm:$0xff] %v353
    %402 = vst [vmem:[#allocation2 + $0x18] sm:$0xff] %v355
    %403 = vst [vmem:[#allocation2 + $0x20] sm:$0xff] %v246
    %404 = vst [vmem:[#allocation2 + $0x28] sm:$0xff] %v248
    %405 = vst [vmem:[#allocation2 + $0x30] sm:$0xff] %v359
    %406 = vst [vmem:[#allocation2 + $0x38] sm:$0xff] %v361
    %407 = vst [vmem:[#allocation2 + $0x40] sm:$0xff] %v252
    %408 = vst [vmem:[#allocation2 + $0x48] sm:$0xff] %v254
    %409 = vst [vmem:[#allocation2 + $0x50] sm:$0xff] %v365
    %410 = vst [vmem:[#allocation2 + $0x58] sm:$0xff] %v367
    %411 = vst [vmem:[#allocation2 + $0x60] sm:$0xff] %v258
    %412 = vst [vmem:[#allocation2 + $0x68] sm:$0xff] %v260
    %413 = vst [vmem:[#allocation2 + $0x70] sm:$0xff] %v371
    %414 = vst [vmem:[#allocation2 + $0x78] sm:$0xff] %v373
    %415 = vst [vmem:[#allocation2 + $0x80] sm:$0xff] %v264
    %416 = vst [vmem:[#allocation2 + $0x88] sm:$0xff] %v266
    %417 = vst [vmem:[#allocation2 + $0x90] sm:$0xff] %v377
    %418 = vst [vmem:[#allocation2 + $0x98] sm:$0xff] %v379
    %419 = vst [vmem:[#allocation2 + $0xa0] sm:$0xff] %v270
    %420 = vst [vmem:[#allocation2 + $0xa8] sm:$0xff] %v272
    %421 = vst [vmem:[#allocation2 + $0xb0] sm:$0xff] %v383
    %422 = vst [vmem:[#allocation2 + $0xb8] sm:$0xff] %v385
    %423 = vst [vmem:[#allocation2 + $0xc0] sm:$0xff] %v276
    %424 = vst [vmem:[#allocation2 + $0xc8] sm:$0xff] %v278
    %425 = vst [vmem:[#allocation2 + $0xd0] sm:$0xff] %v389
    %426 = vst [vmem:[#allocation2 + $0xd8] sm:$0xff] %v391
    %427 = vst [vmem:[#allocation2 + $0xe0] sm:$0xff] %v282
    %428 = vst [vmem:[#allocation2 + $0xe8] sm:$0xff] %v284
    %429 = vst [vmem:[#allocation2 + $0xf0] sm:$0xff] %v395
    %430 = vst [vmem:[#allocation2 + $0xf8] sm:$0xff] %v397
    %v431 = vld [vmem:[#allocation2] sm:$0xff]
    %v432 = vld [vmem:[#allocation2 + $0x8] sm:$0xff]
    %v433 = vld [vmem:[#allocation2 + $0x10] sm:$0xff]
    %v434 = vld [vmem:[#allocation2 + $0x18] sm:$0xff]
    %v435 = vld [vmem:[#allocation8] sm:$0xff]
    %v436 = vld [vmem:[#allocation8 + $0x8] sm:$0xff]
    %v437 = vld [vmem:[#allocation8 + $0x10] sm:$0xff]
    %v438 = vld [vmem:[#allocation8 + $0x18] sm:$0xff]
    %v439 = vld [vmem:[#allocation8 + $0x20] sm:$0xff]
    %v440 = vld [vmem:[#allocation8 + $0x28] sm:$0xff]
    %v441 = vld [vmem:[#allocation8 + $0x30] sm:$0xff]
    %v442 = vld [vmem:[#allocation8 + $0x38] sm:$0xff]
    %v443 = vld [vmem:[#allocation8 + $0x40] sm:$0xff]
    %v444 = vld [vmem:[#allocation8 + $0x48] sm:$0xff]
    %v445 = vld [vmem:[#allocation8 + $0x50] sm:$0xff]
    %v446 = vld [vmem:[#allocation8 + $0x58] sm:$0xff]
    %v447 = vld [vmem:[#allocation8 + $0x60] sm:$0xff]
    %v448 = vld [vmem:[#allocation8 + $0x68] sm:$0xff]
    %v449 = vld [vmem:[#allocation8 + $0x70] sm:$0xff]
    %v450 = vld [vmem:[#allocation8 + $0x78] sm:$0xff]
    %v451 = vld [vmem:[#allocation8 + $0x80] sm:$0xff]
    %v452 = vld [vmem:[#allocation8 + $0x88] sm:$0xff]
    %v453 = vld [vmem:[#allocation8 + $0x90] sm:$0xff]
    %v454 = vld [vmem:[#allocation8 + $0x98] sm:$0xff]
    %v455 = vld [vmem:[#allocation8 + $0xa0] sm:$0xff]
    %v456 = vld [vmem:[#allocation8 + $0xa8] sm:$0xff]
    %v457 = vld [vmem:[#allocation8 + $0xb0] sm:$0xff]
    %v458 = vld [vmem:[#allocation8 + $0xb8] sm:$0xff]
    %v459 = vld [vmem:[#allocation8 + $0xc0] sm:$0xff]
    %v460 = vld [vmem:[#allocation8 + $0xc8] sm:$0xff]
    %v461 = vld [vmem:[#allocation8 + $0xd0] sm:$0xff]
    %v462 = vld [vmem:[#allocation8 + $0xd8] sm:$0xff]
    %v463 = vld [vmem:[#allocation8 + $0xe0] sm:$0xff]
    %v464 = vld [vmem:[#allocation8 + $0xe8] sm:$0xff]
    %v465 = vld [vmem:[#allocation8 + $0xf0] sm:$0xff]
    %v466 = vld [vmem:[#allocation8 + $0xf8] sm:$0xff]
    %v467 = vld [vmem:[#allocation8 + $0x100] sm:$0xff]
    %v468 = vld [vmem:[#allocation8 + $0x108] sm:$0xff]
    %v469 = vld [vmem:[#allocation8 + $0x110] sm:$0xff]
    %v470 = vld [vmem:[#allocation8 + $0x118] sm:$0xff]
    %v471 = vld [vmem:[#allocation8 + $0x120] sm:$0xff]
    %v472 = vld [vmem:[#allocation8 + $0x128] sm:$0xff]
    %v473 = vld [vmem:[#allocation8 + $0x130] sm:$0xff]
    %v474 = vld [vmem:[#allocation8 + $0x138] sm:$0xff]
    %v475 = vld [vmem:[#allocation8 + $0x140] sm:$0xff]
    %v476 = vld [vmem:[#allocation8 + $0x148] sm:$0xff]
    %v477 = vld [vmem:[#allocation8 + $0x150] sm:$0xff]
    %v478 = vld [vmem:[#allocation8 + $0x158] sm:$0xff]
    %v479 = vld [vmem:[#allocation8 + $0x160] sm:$0xff]
    %v480 = vld [vmem:[#allocation8 + $0x168] sm:$0xff]
    %v481 = vld [vmem:[#allocation8 + $0x170] sm:$0xff]
    %v482 = vld [vmem:[#allocation8 + $0x178] sm:$0xff]
    %v483 = vld [vmem:[#allocation8 + $0x180] sm:$0xff]
    %v484 = vld [vmem:[#allocation8 + $0x188] sm:$0xff]
    %v485 = vld [vmem:[#allocation8 + $0x190] sm:$0xff]
    %v486 = vld [vmem:[#allocation8 + $0x198] sm:$0xff]
    %v487 = vld [vmem:[#allocation8 + $0x1a0] sm:$0xff]
    %v488 = vld [vmem:[#allocation8 + $0x1a8] sm:$0xff]
    %v489 = vld [vmem:[#allocation8 + $0x1b0] sm:$0xff]
    %v490 = vld [vmem:[#allocation8 + $0x1b8] sm:$0xff]
    %v491 = vld [vmem:[#allocation8 + $0x1c0] sm:$0xff]
    %v492 = vld [vmem:[#allocation8 + $0x1c8] sm:$0xff]
    %v493 = vld [vmem:[#allocation8 + $0x1d0] sm:$0xff]
    %v494 = vld [vmem:[#allocation8 + $0x1d8] sm:$0xff]
    %v495 = vld [vmem:[#allocation8 + $0x1e0] sm:$0xff]
    %v496 = vld [vmem:[#allocation8 + $0x1e8] sm:$0xff]
    %v497 = vld [vmem:[#allocation8 + $0x1f0] sm:$0xff]
    %v498 = vld [vmem:[#allocation8 + $0x1f8] sm:$0xff]
    %499 = vmatprep.subr.mxu0 %v436
    %500 = vmatpush1.msra.mxu0 %v435
    %501 = vmatprep.subr.mxu0 %v440
    %502 = vmatpush1.msra.mxu0 %v439
    %503 = vmatprep.subr.mxu0 %v444
    %504 = vmatpush1.msra.mxu0 %v443
    %505 = vmatprep.subr.mxu0 %v448
    %506 = vmatpush1.msra.mxu0 %v447
    %507 = vmatprep.subr.mxu0 %v452
    %508 = vmatpush1.msra.mxu0 %v451
    %509 = vmatprep.subr.mxu0 %v456
    %510 = vmatpush1.msra.mxu0 %v455
    %511 = vmatprep.subr.mxu0 %v460
    %512 = vmatpush1.msra.mxu0 %v459
    %513 = vmatprep.subr.mxu0 %v464
    %514 = vmatpush1.msra.mxu0 %v463
    %515 = vmatprep.subr.mxu0 %v468
    %516 = vmatpush1.msra.mxu0 %v467
    %517 = vmatprep.subr.mxu0 %v472
    %518 = vmatpush1.msra.mxu0 %v471
    %519 = vmatprep.subr.mxu0 %v476
    %520 = vmatpush1.msra.mxu0 %v475
    %521 = vmatprep.subr.mxu0 %v480
    %522 = vmatpush1.msra.mxu0 %v479
    %523 = vmatprep.subr.mxu0 %v484
    %524 = vmatpush1.msra.mxu0 %v483
    %525 = vmatprep.subr.mxu0 %v488
    %526 = vmatpush1.msra.mxu0 %v487
    %527 = vmatprep.subr.mxu0 %v492
    %528 = vmatpush1.msra.mxu0 %v491
    %529 = vmatprep.subr.mxu0 %v496
    %530 = vmatpush1.msra.mxu0 %v495
    %531 = vmatprep.subr.mxu0 0.0
    %532 = vmatpush1.msra.mxu0 0.0
    %533 = vmatprep.subr.mxu0 0.0
    %534 = vmatpush1.msra.mxu0 0.0
    %535 = vmatprep.subr.mxu0 0.0
    %536 = vmatpush1.msra.mxu0 0.0
    %537 = vmatprep.subr.mxu0 0.0
    %538 = vmatpush1.msra.mxu0 0.0
    %539 = vmatprep.subr.mxu0 0.0
    %540 = vmatpush1.msra.mxu0 0.0
    %541 = vmatprep.subr.mxu0 0.0
    %542 = vmatpush1.msra.mxu0 0.0
    %543 = vmatprep.subr.mxu0 0.0
    %544 = vmatpush1.msra.mxu0 0.0
    %545 = vmatprep.subr.mxu0 0.0
    %546 = vmatpush1.msra.mxu0 0.0
    %547 = vmatprep.subr.mxu0 0.0
    %548 = vmatpush1.msra.mxu0 0.0
    %549 = vmatprep.subr.mxu0 0.0
    %550 = vmatpush1.msra.mxu0 0.0
    %551 = vmatprep.subr.mxu0 0.0
    %552 = vmatpush1.msra.mxu0 0.0
    %553 = vmatprep.subr.mxu0 0.0
    %554 = vmatpush1.msra.mxu0 0.0
    %555 = vmatprep.subr.mxu0 0.0
    %556 = vmatpush1.msra.mxu0 0.0
    %557 = vmatprep.subr.mxu0 0.0
    %558 = vmatpush1.msra.mxu0 0.0
    %559 = vmatprep.subr.mxu0 0.0
    %560 = vmatpush1.msra.mxu0 0.0
    %561 = vmatprep.subr.mxu0 0.0
    %562 = vmatpush1.msra.mxu0 0.0
    %563 = vmatprep.mubr.f32.mxu0 0.0
    %564 = vmatmul.mubr.f32.gmra.mrb[0].mxu0 0.0
    %v565 = vpop.f32.mrb[0].mxu0
    %v566 = vadd.f32 0.0, %v565
    %v567 = vpop.f32.mrb[0].mxu0
    %v568 = vadd.f32 0.0, %v567
    %569 = vdwg.mxu0
    %570 = vmatprep.subr.mxu0 %v438
    %571 = vmatpush1.msra.mxu0 %v437
    %572 = vmatprep.subr.mxu0 %v442
    %573 = vmatpush1.msra.mxu0 %v441
    %574 = vmatprep.subr.mxu0 %v446
    %575 = vmatpush1.msra.mxu0 %v445
    %576 = vmatprep.subr.mxu0 %v450
    %577 = vmatpush1.msra.mxu0 %v449
    %578 = vmatprep.subr.mxu0 %v454
    %579 = vmatpush1.msra.mxu0 %v453
    %580 = vmatprep.subr.mxu0 %v458
    %581 = vmatpush1.msra.mxu0 %v457
    %582 = vmatprep.subr.mxu0 %v462
    %583 = vmatpush1.msra.mxu0 %v461
    %584 = vmatprep.subr.mxu0 %v466
    %585 = vmatpush1.msra.mxu0 %v465
    %586 = vmatprep.subr.mxu0 %v470
    %587 = vmatpush1.msra.mxu0 %v469
    %588 = vmatprep.subr.mxu0 %v474
    %589 = vmatpush1.msra.mxu0 %v473
    %590 = vmatprep.subr.mxu0 %v478
    %591 = vmatpush1.msra.mxu0 %v477
    %592 = vmatprep.subr.mxu0 %v482
    %593 = vmatpush1.msra.mxu0 %v481
    %594 = vmatprep.subr.mxu0 %v486
    %595 = vmatpush1.msra.mxu0 %v485
    %596 = vmatprep.subr.mxu0 %v490
    %597 = vmatpush1.msra.mxu0 %v489
    %598 = vmatprep.subr.mxu0 %v494
    %599 = vmatpush1.msra.mxu0 %v493
    %600 = vmatprep.subr.mxu0 %v498
    %601 = vmatpush1.msra.mxu0 %v497
    %602 = vmatprep.subr.mxu0 0.0
    %603 = vmatpush1.msra.mxu0 0.0
    %604 = vmatprep.subr.mxu0 0.0
    %605 = vmatpush1.msra.mxu0 0.0
    %606 = vmatprep.subr.mxu0 0.0
    %607 = vmatpush1.msra.mxu0 0.0
    %608 = vmatprep.subr.mxu0 0.0
    %609 = vmatpush1.msra.mxu0 0.0
    %610 = vmatprep.subr.mxu0 0.0
    %611 = vmatpush1.msra.mxu0 0.0
    %612 = vmatprep.subr.mxu0 0.0
    %613 = vmatpush1.msra.mxu0 0.0
    %614 = vmatprep.subr.mxu0 0.0
    %615 = vmatpush1.msra.mxu0 0.0
    %616 = vmatprep.subr.mxu0 0.0
    %617 = vmatpush1.msra.mxu0 0.0
    %618 = vmatprep.subr.mxu0 0.0
    %619 = vmatpush1.msra.mxu0 0.0
    %620 = vmatprep.subr.mxu0 0.0
    %621 = vmatpush1.msra.mxu0 0.0
    %622 = vmatprep.subr.mxu0 0.0
    %623 = vmatpush1.msra.mxu0 0.0
    %624 = vmatprep.subr.mxu0 0.0
    %625 = vmatpush1.msra.mxu0 0.0
    %626 = vmatprep.subr.mxu0 0.0
    %627 = vmatpush1.msra.mxu0 0.0
    %628 = vmatprep.subr.mxu0 0.0
    %629 = vmatpush1.msra.mxu0 0.0
    %630 = vmatprep.subr.mxu0 0.0
    %631 = vmatpush1.msra.mxu0 0.0
    %632 = vmatprep.subr.mxu0 0.0
    %633 = vmatpush1.msra.mxu0 0.0
    %634 = vmatprep.mubr.f32.mxu0 0.0
    %635 = vmatmul.mubr.f32.gmra.mrb[0].mxu0 0.0
    %v636 = vpop.f32.mrb[0].mxu0
    %v637 = vadd.f32 0.0, %v636
    %v638 = vpop.f32.mrb[0].mxu0
    %v639 = vadd.f32 0.0, %v638
    %640 = vdwg.mxu0
    %v641 = vadd.f32 %v431, %v566
    %v642 = vadd.f32 %v432, %v568
    %v643 = vadd.f32 %v433, %v637
    %v644 = vadd.f32 %v434, %v639
    %v645 = vxor.u32 %v641, 2147483648
    %v646 = vmul.f32 %v645, 1.442695
    %v647 = vpow.pop %v646
    %v648 = vadd.f32 %v647, 1.0
    %v649 = vrcp.pop %v648
    %v650 = vmul.f32 1.0, %v649
    %v651 = vxor.u32 %v642, 2147483648
    %v652 = vmul.f32 %v651, 1.442695
    %v653 = vpow.pop %v652
    %v654 = vadd.f32 %v653, 1.0
    %v655 = vrcp.pop %v654
    %v656 = vmul.f32 1.0, %v655
    %v657 = vtanh.pop %v643
    %v658 = vxor.u32 %v644, 2147483648
    %v659 = vmul.f32 %v658, 1.442695
    %v660 = vpow.pop %v659
    %v661 = vadd.f32 %v660, 1.0
    %v662 = vrcp.pop %v661
    %v663 = vmul.f32 1.0, %v662
    %v664 = vmul.f32 %v656, 0.0
    %v665 = vmul.f32 %v650, %v657
    %v666 = vadd.f32 %v664, %v665
    %v667 = vtanh.pop %v666
    %v668 = vmul.f32 %v663, %v667
    %v669 = vld [vmem:[#allocation2 + $0x20] sm:$0xff]
    %v670 = vld [vmem:[#allocation2 + $0x28] sm:$0xff]
    %v671 = vld [vmem:[#allocation2 + $0x30] sm:$0xff]
    %v672 = vld [vmem:[#allocation2 + $0x38] sm:$0xff]
    %673 = vmatprep.subr.mxu0 %v436
    %674 = vmatpush1.msra.mxu0 %v435
    %675 = vmatprep.subr.mxu0 %v440
    %676 = vmatpush1.msra.mxu0 %v439
    %677 = vmatprep.subr.mxu0 %v444
    %678 = vmatpush1.msra.mxu0 %v443
    %679 = vmatprep.subr.mxu0 %v448
    %680 = vmatpush1.msra.mxu0 %v447
    %681 = vmatprep.subr.mxu0 %v452
    %682 = vmatpush1.msra.mxu0 %v451
    %683 = vmatprep.subr.mxu0 %v456
    %684 = vmatpush1.msra.mxu0 %v455
    %685 = vmatprep.subr.mxu0 %v460
    %686 = vmatpush1.msra.mxu0 %v459
    %687 = vmatprep.subr.mxu0 %v464
    %688 = vmatpush1.msra.mxu0 %v463
    %689 = vmatprep.subr.mxu0 %v468
    %690 = vmatpush1.msra.mxu0 %v467
    %691 = vmatprep.subr.mxu0 %v472
    %692 = vmatpush1.msra.mxu0 %v471
    %693 = vmatprep.subr.mxu0 %v476
    %694 = vmatpush1.msra.mxu0 %v475
    %695 = vmatprep.subr.mxu0 %v480
    %696 = vmatpush1.msra.mxu0 %v479
    %697 = vmatprep.subr.mxu0 %v484
    %698 = vmatpush1.msra.mxu0 %v483
    %699 = vmatprep.subr.mxu0 %v488
    %700 = vmatpush1.msra.mxu0 %v487
    %701 = vmatprep.subr.mxu0 %v492
    %702 = vmatpush1.msra.mxu0 %v491
    %703 = vmatprep.subr.mxu0 %v496
    %704 = vmatpush1.msra.mxu0 %v495
    %705 = vmatprep.subr.mxu0 0.0
    %706 = vmatpush1.msra.mxu0 0.0
    %707 = vmatprep.subr.mxu0 0.0
    %708 = vmatpush1.msra.mxu0 0.0
    %709 = vmatprep.subr.mxu0 0.0
    %710 = vmatpush1.msra.mxu0 0.0
    %711 = vmatprep.subr.mxu0 0.0
    %712 = vmatpush1.msra.mxu0 0.0
    %713 = vmatprep.subr.mxu0 0.0
    %714 = vmatpush1.msra.mxu0 0.0
    %715 = vmatprep.subr.mxu0 0.0
    %716 = vmatpush1.msra.mxu0 0.0
    %717 = vmatprep.subr.mxu0 0.0
    %718 = vmatpush1.msra.mxu0 0.0
    %719 = vmatprep.subr.mxu0 0.0
    %720 = vmatpush1.msra.mxu0 0.0
    %721 = vmatprep.subr.mxu0 0.0
    %722 = vmatpush1.msra.mxu0 0.0
    %723 = vmatprep.subr.mxu0 0.0
    %724 = vmatpush1.msra.mxu0 0.0
    %725 = vmatprep.subr.mxu0 0.0
    %726 = vmatpush1.msra.mxu0 0.0
    %727 = vmatprep.subr.mxu0 0.0
    %728 = vmatpush1.msra.mxu0 0.0
    %729 = vmatprep.subr.mxu0 0.0
    %730 = vmatpush1.msra.mxu0 0.0
    %731 = vmatprep.subr.mxu0 0.0
    %732 = vmatpush1.msra.mxu0 0.0
    %733 = vmatprep.subr.mxu0 0.0
    %734 = vmatpush1.msra.mxu0 0.0
    %735 = vmatprep.subr.mxu0 0.0
    %736 = vmatpush1.msra.mxu0 0.0
    %737 = vmatprep.mubr.f32.mxu0 0.0
    %738 = vmatmul.mubr.f32.gmra.mrb[0].mxu0 %v668
    %v739 = vpop.f32.mrb[0].mxu0
    %v740 = vadd.f32 0.0, %v739
    %v741 = vpop.f32.mrb[0].mxu0
    %v742 = vadd.f32 0.0, %v741
    %743 = vdwg.mxu0
    %744 = vmatprep.subr.mxu0 %v438
    %745 = vmatpush1.msra.mxu0 %v437
    %746 = vmatprep.subr.mxu0 %v442
    %747 = vmatpush1.msra.mxu0 %v441
    %748 = vmatprep.subr.mxu0 %v446
    %749 = vmatpush1.msra.mxu0 %v445
    %750 = vmatprep.subr.mxu0 %v450
    %751 = vmatpush1.msra.mxu0 %v449
    %752 = vmatprep.subr.mxu0 %v454
    %753 = vmatpush1.msra.mxu0 %v453
    %754 = vmatprep.subr.mxu0 %v458
    %755 = vmatpush1.msra.mxu0 %v457
    %756 = vmatprep.subr.mxu0 %v462
    %757 = vmatpush1.msra.mxu0 %v461
    %758 = vmatprep.subr.mxu0 %v466
    %759 = vmatpush1.msra.mxu0 %v465
    %760 = vmatprep.subr.mxu0 %v470
    %761 = vmatpush1.msra.mxu0 %v469
    %762 = vmatprep.subr.mxu0 %v474
    %763 = vmatpush1.msra.mxu0 %v473
    %764 = vmatprep.subr.mxu0 %v478
    %765 = vmatpush1.msra.mxu0 %v477
    %766 = vmatprep.subr.mxu0 %v482
    %767 = vmatpush1.msra.mxu0 %v481
    %768 = vmatprep.subr.mxu0 %v486
    %769 = vmatpush1.msra.mxu0 %v485
    %770 = vmatprep.subr.mxu0 %v490
    %771 = vmatpush1.msra.mxu0 %v489
    %772 = vmatprep.subr.mxu0 %v494
    %773 = vmatpush1.msra.mxu0 %v493
    %774 = vmatprep.subr.mxu0 %v498
    %775 = vmatpush1.msra.mxu0 %v497
    %776 = vmatprep.subr.mxu0 0.0
    %777 = vmatpush1.msra.mxu0 0.0
    %778 = vmatprep.subr.mxu0 0.0
    %779 = vmatpush1.msra.mxu0 0.0
    %780 = vmatprep.subr.mxu0 0.0
    %781 = vmatpush1.msra.mxu0 0.0
    %782 = vmatprep.subr.mxu0 0.0
    %783 = vmatpush1.msra.mxu0 0.0
    %784 = vmatprep.subr.mxu0 0.0
    %785 = vmatpush1.msra.mxu0 0.0
    %786 = vmatprep.subr.mxu0 0.0
    %787 = vmatpush1.msra.mxu0 0.0
    %788 = vmatprep.subr.mxu0 0.0
    %789 = vmatpush1.msra.mxu0 0.0
    %790 = vmatprep.subr.mxu0 0.0
    %791 = vmatpush1.msra.mxu0 0.0
    %792 = vmatprep.subr.mxu0 0.0
    %793 = vmatpush1.msra.mxu0 0.0
    %794 = vmatprep.subr.mxu0 0.0
    %795 = vmatpush1.msra.mxu0 0.0
    %796 = vmatprep.subr.mxu0 0.0
    %797 = vmatpush1.msra.mxu0 0.0
    %798 = vmatprep.subr.mxu0 0.0
    %799 = vmatpush1.msra.mxu0 0.0
    %800 = vmatprep.subr.mxu0 0.0
    %801 = vmatpush1.msra.mxu0 0.0
    %802 = vmatprep.subr.mxu0 0.0
    %803 = vmatpush1.msra.mxu0 0.0
    %804 = vmatprep.subr.mxu0 0.0
    %805 = vmatpush1.msra.mxu0 0.0
    %806 = vmatprep.subr.mxu0 0.0
    %807 = vmatpush1.msra.mxu0 0.0
    %808 = vmatprep.mubr.f32.mxu0 0.0
    %809 = vmatmul.mubr.f32.gmra.mrb[0].mxu0 %v668
    %v810 = vpop.f32.mrb[0].mxu0
    %v811 = vadd.f32 0.0, %v810
    %v812 = vpop.f32.mrb[0].mxu0
    %v813 = vadd.f32 0.0, %v812
    %814 = vdwg.mxu0
    %v815 = vadd.f32 %v669, %v740
    %v816 = vadd.f32 %v670, %v742
    %v817 = vadd.f32 %v671, %v811
    %v818 = vadd.f32 %v672, %v813
    %v819 = vxor.u32 %v815, 2147483648
    %v820 = vmul.f32 %v819, 1.442695
    %v821 = vpow.pop %v820
    %v822 = vadd.f32 %v821, 1.0
    %v823 = vrcp.pop %v822
    %v824 = vmul.f32 1.0, %v823
    %v825 = vxor.u32 %v816, 2147483648
    %v826 = vmul.f32 %v825, 1.442695
    %v827 = vpow.pop %v826
    %v828 = vadd.f32 %v827, 1.0
    %v829 = vrcp.pop %v828
    %v830 = vmul.f32 1.0, %v829
    %v831 = vtanh.pop %v817
    %v832 = vxor.u32 %v818, 2147483648
    %v833 = vmul.f32 %v832, 1.442695
    %v834 = vpow.pop %v833
    %v835 = vadd.f32 %v834, 1.0
    %v836 = vrcp.pop %v835
    %v837 = vmul.f32 1.0, %v836
    %v838 = vmul.f32 %v830, %v666
    %v839 = vmul.f32 %v824, %v831
    %v840 = vadd.f32 %v838, %v839
    %v841 = vtanh.pop %v840
    %v842 = vmul.f32 %v837, %v841
    %v843 = vld [vmem:[#allocation2 + $0x40] sm:$0xff]
    %v844 = vld [vmem:[#allocation2 + $0x48] sm:$0xff]
    %v845 = vld [vmem:[#allocation2 + $0x50] sm:$0xff]
    %v846 = vld [vmem:[#allocation2 + $0x58] sm:$0xff]
    %847 = vmatprep.subr.mxu0 %v436
    %848 = vmatpush1.msra.mxu0 %v435
    %849 = vmatprep.subr.mxu0 %v440
    %850 = vmatpush1.msra.mxu0 %v439
    %851 = vmatprep.subr.mxu0 %v444
    %852 = vmatpush1.msra.mxu0 %v443
    %853 = vmatprep.subr.mxu0 %v448
    %854 = vmatpush1.msra.mxu0 %v447
    %855 = vmatprep.subr.mxu0 %v452
    %856 = vmatpush1.msra.mxu0 %v451
    %857 = vmatprep.subr.mxu0 %v456
    %858 = vmatpush1.msra.mxu0 %v455
    %859 = vmatprep.subr.mxu0 %v460
    %860 = vmatpush1.msra.mxu0 %v459
    %861 = vmatprep.subr.mxu0 %v464
    %862 = vmatpush1.msra.mxu0 %v463
    %863 = vmatprep.subr.mxu0 %v468
    %864 = vmatpush1.msra.mxu0 %v467
    %865 = vmatprep.subr.mxu0 %v472
    %866 = vmatpush1.msra.mxu0 %v471
    %867 = vmatprep.subr.mxu0 %v476
    %868 = vmatpush1.msra.mxu0 %v475
    %869 = vmatprep.subr.mxu0 %v480
    %870 = vmatpush1.msra.mxu0 %v479
    %871 = vmatprep.subr.mxu0 %v484
    %872 = vmatpush1.msra.mxu0 %v483
    %873 = vmatprep.subr.mxu0 %v488
    %874 = vmatpush1.msra.mxu0 %v487
    %875 = vmatprep.subr.mxu0 %v492
    %876 = vmatpush1.msra.mxu0 %v491
    %877 = vmatprep.subr.mxu0 %v496
    %878 = vmatpush1.msra.mxu0 %v495
    %879 = vmatprep.subr.mxu0 0.0
    %880 = vmatpush1.msra.mxu0 0.0
    %881 = vmatprep.subr.mxu0 0.0
    %882 = vmatpush1.msra.mxu0 0.0
    %883 = vmatprep.subr.mxu0 0.0
    %884 = vmatpush1.msra.mxu0 0.0
    %885 = vmatprep.subr.mxu0 0.0
    %886 = vmatpush1.msra.mxu0 0.0
    %887 = vmatprep.subr.mxu0 0.0
    %888 = vmatpush1.msra.mxu0 0.0
    %889 = vmatprep.subr.mxu0 0.0
    %890 = vmatpush1.msra.mxu0 0.0
    %891 = vmatprep.subr.mxu0 0.0
    %892 = vmatpush1.msra.mxu0 0.0
    %893 = vmatprep.subr.mxu0 0.0
    %894 = vmatpush1.msra.mxu0 0.0
    %895 = vmatprep.subr.mxu0 0.0
    %896 = vmatpush1.msra.mxu0 0.0
    %897 = vmatprep.subr.mxu0 0.0
    %898 = vmatpush1.msra.mxu0 0.0
    %899 = vmatprep.subr.mxu0 0.0
    %900 = vmatpush1.msra.mxu0 0.0
    %901 = vmatprep.subr.mxu0 0.0
    %902 = vmatpush1.msra.mxu0 0.0
    %903 = vmatprep.subr.mxu0 0.0
    %904 = vmatpush1.msra.mxu0 0.0
    %905 = vmatprep.subr.mxu0 0.0
    %906 = vmatpush1.msra.mxu0 0.0
    %907 = vmatprep.subr.mxu0 0.0
    %908 = vmatpush1.msra.mxu0 0.0
    %909 = vmatprep.subr.mxu0 0.0
    %910 = vmatpush1.msra.mxu0 0.0
    %911 = vmatprep.mubr.f32.mxu0 0.0
    %912 = vmatmul.mubr.f32.gmra.mrb[0].mxu0 %v842
    %v913 = vpop.f32.mrb[0].mxu0
    %v914 = vadd.f32 0.0, %v913
    %v915 = vpop.f32.mrb[0].mxu0
    %v916 = vadd.f32 0.0, %v915
    %917 = vdwg.mxu0
    %918 = vmatprep.subr.mxu0 %v438
    %919 = vmatpush1.msra.mxu0 %v437
    %920 = vmatprep.subr.mxu0 %v442
    %921 = vmatpush1.msra.mxu0 %v441
    %922 = vmatprep.subr.mxu0 %v446
    %923 = vmatpush1.msra.mxu0 %v445
    %924 = vmatprep.subr.mxu0 %v450
    %925 = vmatpush1.msra.mxu0 %v449
    %926 = vmatprep.subr.mxu0 %v454
    %927 = vmatpush1.msra.mxu0 %v453
    %928 = vmatprep.subr.mxu0 %v458
    %929 = vmatpush1.msra.mxu0 %v457
    %930 = vmatprep.subr.mxu0 %v462
    %931 = vmatpush1.msra.mxu0 %v461
    %932 = vmatprep.subr.mxu0 %v466
    %933 = vmatpush1.msra.mxu0 %v465
    %934 = vmatprep.subr.mxu0 %v470
    %935 = vmatpush1.msra.mxu0 %v469
    %936 = vmatprep.subr.mxu0 %v474
    %937 = vmatpush1.msra.mxu0 %v473
    %938 = vmatprep.subr.mxu0 %v478
    %939 = vmatpush1.msra.mxu0 %v477
    %940 = vmatprep.subr.mxu0 %v482
    %941 = vmatpush1.msra.mxu0 %v481
    %942 = vmatprep.subr.mxu0 %v486
    %943 = vmatpush1.msra.mxu0 %v485
    %944 = vmatprep.subr.mxu0 %v490
    %945 = vmatpush1.msra.mxu0 %v489
    %946 = vmatprep.subr.mxu0 %v494
    %947 = vmatpush1.msra.mxu0 %v493
    %948 = vmatprep.subr.mxu0 %v498
    %949 = vmatpush1.msra.mxu0 %v497
    %950 = vmatprep.subr.mxu0 0.0
    %951 = vmatpush1.msra.mxu0 0.0
    %952 = vmatprep.subr.mxu0 0.0
    %953 = vmatpush1.msra.mxu0 0.0
    %954 = vmatprep.subr.mxu0 0.0
    %955 = vmatpush1.msra.mxu0 0.0
    %956 = vmatprep.subr.mxu0 0.0
    %957 = vmatpush1.msra.mxu0 0.0
    %958 = vmatprep.subr.mxu0 0.0
    %959 = vmatpush1.msra.mxu0 0.0
    %960 = vmatprep.subr.mxu0 0.0
    %961 = vmatpush1.msra.mxu0 0.0
    %962 = vmatprep.subr.mxu0 0.0
    %963 = vmatpush1.msra.mxu0 0.0
    %964 = vmatprep.subr.mxu0 0.0
    %965 = vmatpush1.msra.mxu0 0.0
    %966 = vmatprep.subr.mxu0 0.0
    %967 = vmatpush1.msra.mxu0 0.0
    %968 = vmatprep.subr.mxu0 0.0
    %969 = vmatpush1.msra.mxu0 0.0
    %970 = vmatprep.subr.mxu0 0.0
    %971 = vmatpush1.msra.mxu0 0.0
    %972 = vmatprep.subr.mxu0 0.0
    %973 = vmatpush1.msra.mxu0 0.0
    %974 = vmatprep.subr.mxu0 0.0
    %975 = vmatpush1.msra.mxu0 0.0
    %976 = vmatprep.subr.mxu0 0.0
    %977 = vmatpush1.msra.mxu0 0.0
    %978 = vmatprep.subr.mxu0 0.0
    %979 = vmatpush1.msra.mxu0 0.0
    %980 = vmatprep.subr.mxu0 0.0
    %981 = vmatpush1.msra.mxu0 0.0
    %982 = vmatprep.mubr.f32.mxu0 0.0
    %983 = vmatmul.mubr.f32.gmra.mrb[0].mxu0 %v842
    %v984 = vpop.f32.mrb[0].mxu0
    %v985 = vadd.f32 0.0, %v984
    %v986 = vpop.f32.mrb[0].mxu0
    %v987 = vadd.f32 0.0, %v986
    %988 = vdwg.mxu0
    %v989 = vadd.f32 %v843, %v914
    %v990 = vadd.f32 %v844, %v916
    %v991 = vadd.f32 %v845, %v985
    %v992 = vadd.f32 %v846, %v987
    %v993 = vxor.u32 %v989, 2147483648
    %v994 = vmul.f32 %v993, 1.442695
    %v995 = vpow.pop %v994
    %v996 = vadd.f32 %v995, 1.0
    %v997 = vrcp.pop %v996
    %v998 = vmul.f32 1.0, %v997
    %v999 = vxor.u32 %v990, 2147483648
    %v1000 = vmul.f32 %v999, 1.442695
    %v1001 = vpow.pop %v1000
    %v1002 = vadd.f32 %v1001, 1.0
    %v1003 = vrcp.pop %v1002
    %v1004 = vmul.f32 1.0, %v1003
    %v1005 = vtanh.pop %v991
    %v1006 = vxor.u32 %v992, 2147483648
    %v1007 = vmul.f32 %v1006, 1.442695
    %v1008 = vpow.pop %v1007
    %v1009 = vadd.f32 %v1008, 1.0
    %v1010 = vrcp.pop %v1009
    %v1011 = vmul.f32 1.0, %v1010
    %v1012 = vmul.f32 %v1004, %v840
    %v1013 = vmul.f32 %v998, %v1005
    %v1014 = vadd.f32 %v1012, %v1013
    %v1015 = vtanh.pop %v1014
    %v1016 = vmul.f32 %v1011, %v1015
    %v1017 = vld [vmem:[#allocation2 + $0x60] sm:$0xff]
    %v1018 = vld [vmem:[#allocation2 + $0x68] sm:$0xff]
    %v1019 = vld [vmem:[#allocation2 + $0x70] sm:$0xff]
    %v1020 = vld [vmem:[#allocation2 + $0x78] sm:$0xff]
    %1021 = vmatprep.subr.mxu0 %v436
    %1022 = vmatpush1.msra.mxu0 %v435
    %1023 = vmatprep.subr.mxu0 %v440
    %1024 = vmatpush1.msra.mxu0 %v439
    %1025 = vmatprep.subr.mxu0 %v444
    %1026 = vmatpush1.msra.mxu0 %v443
    %1027 = vmatprep.subr.mxu0 %v448
    %1028 = vmatpush1.msra.mxu0 %v447
    %1029 = vmatprep.subr.mxu0 %v452
    %1030 = vmatpush1.msra.mxu0 %v451
    %1031 = vmatprep.subr.mxu0 %v456
    %1032 = vmatpush1.msra.mxu0 %v455
    %1033 = vmatprep.subr.mxu0 %v460
    %1034 = vmatpush1.msra.mxu0 %v459
    %1035 = vmatprep.subr.mxu0 %v464
    %1036 = vmatpush1.msra.mxu0 %v463
    %1037 = vmatprep.subr.mxu0 %v468
    %1038 = vmatpush1.msra.mxu0 %v467
    %1039 = vmatprep.subr.mxu0 %v472
    %1040 = vmatpush1.msra.mxu0 %v471
    %1041 = vmatprep.subr.mxu0 %v476
    %1042 = vmatpush1.msra.mxu0 %v475
    %1043 = vmatprep.subr.mxu0 %v480
    %1044 = vmatpush1.msra.mxu0 %v479
    %1045 = vmatprep.subr.mxu0 %v484
    %1046 = vmatpush1.msra.mxu0 %v483
    %1047 = vmatprep.subr.mxu0 %v488
    %1048 = vmatpush1.msra.mxu0 %v487
    %1049 = vmatprep.subr.mxu0 %v492
    %1050 = vmatpush1.msra.mxu0 %v491
    %1051 = vmatprep.subr.mxu0 %v496
    %1052 = vmatpush1.msra.mxu0 %v495
    %1053 = vmatprep.subr.mxu0 0.0
    %1054 = vmatpush1.msra.mxu0 0.0
    %1055 = vmatprep.subr.mxu0 0.0
    %1056 = vmatpush1.msra.mxu0 0.0
    %1057 = vmatprep.subr.mxu0 0.0
    %1058 = vmatpush1.msra.mxu0 0.0
    %1059 = vmatprep.subr.mxu0 0.0
    %1060 = vmatpush1.msra.mxu0 0.0
    %1061 = vmatprep.subr.mxu0 0.0
    %1062 = vmatpush1.msra.mxu0 0.0
    %1063 = vmatprep.subr.mxu0 0.0
    %1064 = vmatpush1.msra.mxu0 0.0
    %1065 = vmatprep.subr.mxu0 0.0
    %1066 = vmatpush1.msra.mxu0 0.0
    %1067 = vmatprep.subr.mxu0 0.0
    %1068 = vmatpush1.msra.mxu0 0.0
    %1069 = vmatprep.subr.mxu0 0.0
    %1070 = vmatpush1.msra.mxu0 0.0
    %1071 = vmatprep.subr.mxu0 0.0
    %1072 = vmatpush1.msra.mxu0 0.0
    %1073 = vmatprep.subr.mxu0 0.0
    %1074 = vmatpush1.msra.mxu0 0.0
    %1075 = vmatprep.subr.mxu0 0.0
    %1076 = vmatpush1.msra.mxu0 0.0
    %1077 = vmatprep.subr.mxu0 0.0
    %1078 = vmatpush1.msra.mxu0 0.0
    %1079 = vmatprep.subr.mxu0 0.0
    %1080 = vmatpush1.msra.mxu0 0.0
    %1081 = vmatprep.subr.mxu0 0.0
    %1082 = vmatpush1.msra.mxu0 0.0
    %1083 = vmatprep.subr.mxu0 0.0
    %1084 = vmatpush1.msra.mxu0 0.0
    %1085 = vmatprep.mubr.f32.mxu0 0.0
    %1086 = vmatmul.mubr.f32.gmra.mrb[0].mxu0 %v1016
    %v1087 = vpop.f32.mrb[0].mxu0
    %v1088 = vadd.f32 0.0, %v1087
    %v1089 = vpop.f32.mrb[0].mxu0
    %v1090 = vadd.f32 0.0, %v1089
    %1091 = vdwg.mxu0
    %1092 = vmatprep.subr.mxu0 %v438
    %1093 = vmatpush1.msra.mxu0 %v437
    %1094 = vmatprep.subr.mxu0 %v442
    %1095 = vmatpush1.msra.mxu0 %v441
    %1096 = vmatprep.subr.mxu0 %v446
    %1097 = vmatpush1.msra.mxu0 %v445
    %1098 = vmatprep.subr.mxu0 %v450
    %1099 = vmatpush1.msra.mxu0 %v449
    %1100 = vmatprep.subr.mxu0 %v454
    %1101 = vmatpush1.msra.mxu0 %v453
    %1102 = vmatprep.subr.mxu0 %v458
    %1103 = vmatpush1.msra.mxu0 %v457
    %1104 = vmatprep.subr.mxu0 %v462
    %1105 = vmatpush1.msra.mxu0 %v461
    %1106 = vmatprep.subr.mxu0 %v466
    %1107 = vmatpush1.msra.mxu0 %v465
    %1108 = vmatprep.subr.mxu0 %v470
    %1109 = vmatpush1.msra.mxu0 %v469
    %1110 = vmatprep.subr.mxu0 %v474
    %1111 = vmatpush1.msra.mxu0 %v473
    %1112 = vmatprep.subr.mxu0 %v478
    %1113 = vmatpush1.msra.mxu0 %v477
    %1114 = vmatprep.subr.mxu0 %v482
    %1115 = vmatpush1.msra.mxu0 %v481
    %1116 = vmatprep.subr.mxu0 %v486
    %1117 = vmatpush1.msra.mxu0 %v485
    %1118 = vmatprep.subr.mxu0 %v490
    %1119 = vmatpush1.msra.mxu0 %v489
    %1120 = vmatprep.subr.mxu0 %v494
    %1121 = vmatpush1.msra.mxu0 %v493
    %1122 = vmatprep.subr.mxu0 %v498
    %1123 = vmatpush1.msra.mxu0 %v497
    %1124 = vmatprep.subr.mxu0 0.0
    %1125 = vmatpush1.msra.mxu0 0.0
    %1126 = vmatprep.subr.mxu0 0.0
    %1127 = vmatpush1.msra.mxu0 0.0
    %1128 = vmatprep.subr.mxu0 0.0
    %1129 = vmatpush1.msra.mxu0 0.0
    %1130 = vmatprep.subr.mxu0 0.0
    %1131 = vmatpush1.msra.mxu0 0.0
    %1132 = vmatprep.subr.mxu0 0.0
    %1133 = vmatpush1.msra.mxu0 0.0
    %1134 = vmatprep.subr.mxu0 0.0
    %1135 = vmatpush1.msra.mxu0 0.0
    %1136 = vmatprep.subr.mxu0 0.0
    %1137 = vmatpush1.msra.mxu0 0.0
    %1138 = vmatprep.subr.mxu0 0.0
    %1139 = vmatpush1.msra.mxu0 0.0
    %1140 = vmatprep.subr.mxu0 0.0
    %1141 = vmatpush1.msra.mxu0 0.0
    %1142 = vmatprep.subr.mxu0 0.0
    %1143 = vmatpush1.msra.mxu0 0.0
    %1144 = vmatprep.subr.mxu0 0.0
    %1145 = vmatpush1.msra.mxu0 0.0
    %1146 = vmatprep.subr.mxu0 0.0
    %1147 = vmatpush1.msra.mxu0 0.0
    %1148 = vmatprep.subr.mxu0 0.0
    %1149 = vmatpush1.msra.mxu0 0.0
    %1150 = vmatprep.subr.mxu0 0.0
    %1151 = vmatpush1.msra.mxu0 0.0
    %1152 = vmatprep.subr.mxu0 0.0
    %1153 = vmatpush1.msra.mxu0 0.0
    %1154 = vmatprep.subr.mxu0 0.0
    %1155 = vmatpush1.msra.mxu0 0.0
    %1156 = vmatprep.mubr.f32.mxu0 0.0
    %1157 = vmatmul.mubr.f32.gmra.mrb[0].mxu0 %v1016
    %v1158 = vpop.f32.mrb[0].mxu0
    %v1159 = vadd.f32 0.0, %v1158
    %v1160 = vpop.f32.mrb[0].mxu0
    %v1161 = vadd.f32 0.0, %v1160
    %1162 = vdwg.mxu0
    %v1163 = vadd.f32 %v1017, %v1088
    %v1164 = vadd.f32 %v1018, %v1090
    %v1165 = vadd.f32 %v1019, %v1159
    %v1166 = vadd.f32 %v1020, %v1161
    %v1167 = vxor.u32 %v1163, 2147483648
    %v1168 = vmul.f32 %v1167, 1.442695
    %v1169 = vpow.pop %v1168
    %v1170 = vadd.f32 %v1169, 1.0
    %v1171 = vrcp.pop %v1170
    %v1172 = vmul.f32 1.0, %v1171
    %v1173 = vxor.u32 %v1164, 2147483648
    %v1174 = vmul.f32 %v1173, 1.442695
    %v1175 = vpow.pop %v1174
    %v1176 = vadd.f32 %v1175, 1.0
    %v1177 = vrcp.pop %v1176
    %v1178 = vmul.f32 1.0, %v1177
    %v1179 = vtanh.pop %v1165
    %v1180 = vxor.u32 %v1166, 2147483648
    %v1181 = vmul.f32 %v1180, 1.442695
    %v1182 = vpow.pop %v1181
    %v1183 = vadd.f32 %v1182, 1.0
    %v1184 = vrcp.pop %v1183
    %v1185 = vmul.f32 1.0, %v1184
    %v1186 = vmul.f32 %v1178, %v1014
    %v1187 = vmul.f32 %v1172, %v1179
    %v1188 = vadd.f32 %v1186, %v1187
    %v1189 = vtanh.pop %v1188
    %v1190 = vmul.f32 %v1185, %v1189
    %v1191 = vld [vmem:[#allocation2 + $0x80] sm:$0xff]
    %v1192 = vld [vmem:[#allocation2 + $0x88] sm:$0xff]
    %v1193 = vld [vmem:[#allocation2 + $0x90] sm:$0xff]
    %v1194 = vld [vmem:[#allocation2 + $0x98] sm:$0xff]
    %1195 = vmatprep.subr.mxu0 %v436
    %1196 = vmatpush1.msra.mxu0 %v435
    %1197 = vmatprep.subr.mxu0 %v440
    %1198 = vmatpush1.msra.mxu0 %v439
    %1199 = vmatprep.subr.mxu0 %v444
    %1200 = vmatpush1.msra.mxu0 %v443
    %1201 = vmatprep.subr.mxu0 %v448
    %1202 = vmatpush1.msra.mxu0 %v447
    %1203 = vmatprep.subr.mxu0 %v452
    %1204 = vmatpush1.msra.mxu0 %v451
    %1205 = vmatprep.subr.mxu0 %v456
    %1206 = vmatpush1.msra.mxu0 %v455
    %1207 = vmatprep.subr.mxu0 %v460
    %1208 = vmatpush1.msra.mxu0 %v459
    %1209 = vmatprep.subr.mxu0 %v464
    %1210 = vmatpush1.msra.mxu0 %v463
    %1211 = vmatprep.subr.mxu0 %v468
    %1212 = vmatpush1.msra.mxu0 %v467
    %1213 = vmatprep.subr.mxu0 %v472
    %1214 = vmatpush1.msra.mxu0 %v471
    %1215 = vmatprep.subr.mxu0 %v476
    %1216 = vmatpush1.msra.mxu0 %v475
    %1217 = vmatprep.subr.mxu0 %v480
    %1218 = vmatpush1.msra.mxu0 %v479
    %1219 = vmatprep.subr.mxu0 %v484
    %1220 = vmatpush1.msra.mxu0 %v483
    %1221 = vmatprep.subr.mxu0 %v488
    %1222 = vmatpush1.msra.mxu0 %v487
    %1223 = vmatprep.subr.mxu0 %v492
    %1224 = vmatpush1.msra.mxu0 %v491
    %1225 = vmatprep.subr.mxu0 %v496
    %1226 = vmatpush1.msra.mxu0 %v495
    %1227 = vmatprep.subr.mxu0 0.0
    %1228 = vmatpush1.msra.mxu0 0.0
    %1229 = vmatprep.subr.mxu0 0.0
    %1230 = vmatpush1.msra.mxu0 0.0
    %1231 = vmatprep.subr.mxu0 0.0
    %1232 = vmatpush1.msra.mxu0 0.0
    %1233 = vmatprep.subr.mxu0 0.0
    %1234 = vmatpush1.msra.mxu0 0.0
    %1235 = vmatprep.subr.mxu0 0.0
    %1236 = vmatpush1.msra.mxu0 0.0
    %1237 = vmatprep.subr.mxu0 0.0
    %1238 = vmatpush1.msra.mxu0 0.0
    %1239 = vmatprep.subr.mxu0 0.0
    %1240 = vmatpush1.msra.mxu0 0.0
    %1241 = vmatprep.subr.mxu0 0.0
    %1242 = vmatpush1.msra.mxu0 0.0
    %1243 = vmatprep.subr.mxu0 0.0
    %1244 = vmatpush1.msra.mxu0 0.0
    %1245 = vmatprep.subr.mxu0 0.0
    %1246 = vmatpush1.msra.mxu0 0.0
    %1247 = vmatprep.subr.mxu0 0.0
    %1248 = vmatpush1.msra.mxu0 0.0
    %1249 = vmatprep.subr.mxu0 0.0
    %1250 = vmatpush1.msra.mxu0 0.0
    %1251 = vmatprep.subr.mxu0 0.0
    %1252 = vmatpush1.msra.mxu0 0.0
    %1253 = vmatprep.subr.mxu0 0.0
    %1254 = vmatpush1.msra.mxu0 0.0
    %1255 = vmatprep.subr.mxu0 0.0
    %1256 = vmatpush1.msra.mxu0 0.0
    %1257 = vmatprep.subr.mxu0 0.0
    %1258 = vmatpush1.msra.mxu0 0.0
    %1259 = vmatprep.mubr.f32.mxu0 0.0
    %1260 = vmatmul.mubr.f32.gmra.mrb[0].mxu0 %v1190
    %v1261 = vpop.f32.mrb[0].mxu0
    %v1262 = vadd.f32 0.0, %v1261
    %v1263 = vpop.f32.mrb[0].mxu0
    %v1264 = vadd.f32 0.0, %v1263
    %1265 = vdwg.mxu0
    %1266 = vmatprep.subr.mxu0 %v438
    %1267 = vmatpush1.msra.mxu0 %v437
    %1268 = vmatprep.subr.mxu0 %v442
    %1269 = vmatpush1.msra.mxu0 %v441
    %1270 = vmatprep.subr.mxu0 %v446
    %1271 = vmatpush1.msra.mxu0 %v445
    %1272 = vmatprep.subr.mxu0 %v450
    %1273 = vmatpush1.msra.mxu0 %v449
    %1274 = vmatprep.subr.mxu0 %v454
    %1275 = vmatpush1.msra.mxu0 %v453
    %1276 = vmatprep.subr.mxu0 %v458
    %1277 = vmatpush1.msra.mxu0 %v457
    %1278 = vmatprep.subr.mxu0 %v462
    %1279 = vmatpush1.msra.mxu0 %v461
    %1280 = vmatprep.subr.mxu0 %v466
    %1281 = vmatpush1.msra.mxu0 %v465
    %1282 = vmatprep.subr.mxu0 %v470
    %1283 = vmatpush1.msra.mxu0 %v469
    %1284 = vmatprep.subr.mxu0 %v474
    %1285 = vmatpush1.msra.mxu0 %v473
    %1286 = vmatprep.subr.mxu0 %v478
    %1287 = vmatpush1.msra.mxu0 %v477
    %1288 = vmatprep.subr.mxu0 %v482
    %1289 = vmatpush1.msra.mxu0 %v481
    %1290 = vmatprep.subr.mxu0 %v486
    %1291 = vmatpush1.msra.mxu0 %v485
    %1292 = vmatprep.subr.mxu0 %v490
    %1293 = vmatpush1.msra.mxu0 %v489
    %1294 = vmatprep.subr.mxu0 %v494
    %1295 = vmatpush1.msra.mxu0 %v493
    %1296 = vmatprep.subr.mxu0 %v498
    %1297 = vmatpush1.msra.mxu0 %v497
    %1298 = vmatprep.subr.mxu0 0.0
    %1299 = vmatpush1.msra.mxu0 0.0
    %1300 = vmatprep.subr.mxu0 0.0
    %1301 = vmatpush1.msra.mxu0 0.0
    %1302 = vmatprep.subr.mxu0 0.0
    %1303 = vmatpush1.msra.mxu0 0.0
    %1304 = vmatprep.subr.mxu0 0.0
    %1305 = vmatpush1.msra.mxu0 0.0
    %1306 = vmatprep.subr.mxu0 0.0
    %1307 = vmatpush1.msra.mxu0 0.0
    %1308 = vmatprep.subr.mxu0 0.0
    %1309 = vmatpush1.msra.mxu0 0.0
    %1310 = vmatprep.subr.mxu0 0.0
    %1311 = vmatpush1.msra.mxu0 0.0
    %1312 = vmatprep.subr.mxu0 0.0
    %1313 = vmatpush1.msra.mxu0 0.0
    %1314 = vmatprep.subr.mxu0 0.0
    %1315 = vmatpush1.msra.mxu0 0.0
    %1316 = vmatprep.subr.mxu0 0.0
    %1317 = vmatpush1.msra.mxu0 0.0
    %1318 = vmatprep.subr.mxu0 0.0
    %1319 = vmatpush1.msra.mxu0 0.0
    %1320 = vmatprep.subr.mxu0 0.0
    %1321 = vmatpush1.msra.mxu0 0.0
    %1322 = vmatprep.subr.mxu0 0.0
    %1323 = vmatpush1.msra.mxu0 0.0
    %1324 = vmatprep.subr.mxu0 0.0
    %1325 = vmatpush1.msra.mxu0 0.0
    %1326 = vmatprep.subr.mxu0 0.0
    %1327 = vmatpush1.msra.mxu0 0.0
    %1328 = vmatprep.subr.mxu0 0.0
    %1329 = vmatpush1.msra.mxu0 0.0
    %1330 = vmatprep.mubr.f32.mxu0 0.0
    %1331 = vmatmul.mubr.f32.gmra.mrb[0].mxu0 %v1190
    %v1332 = vpop.f32.mrb[0].mxu0
    %v1333 = vadd.f32 0.0, %v1332
    %v1334 = vpop.f32.mrb[0].mxu0
    %v1335 = vadd.f32 0.0, %v1334
    %1336 = vdwg.mxu0
    %v1337 = vadd.f32 %v1191, %v1262
    %v1338 = vadd.f32 %v1192, %v1264
    %v1339 = vadd.f32 %v1193, %v1333
    %v1340 = vadd.f32 %v1194, %v1335
    %v1341 = vxor.u32 %v1337, 2147483648
    %v1342 = vmul.f32 %v1341, 1.442695
    %v1343 = vpow.pop %v1342
    %v1344 = vadd.f32 %v1343, 1.0
    %v1345 = vrcp.pop %v1344
    %v1346 = vmul.f32 1.0, %v1345
    %v1347 = vxor.u32 %v1338, 2147483648
    %v1348 = vmul.f32 %v1347, 1.442695
    %v1349 = vpow.pop %v1348
    %v1350 = vadd.f32 %v1349, 1.0
    %v1351 = vrcp.pop %v1350
    %v1352 = vmul.f32 1.0, %v1351
    %v1353 = vtanh.pop %v1339
    %v1354 = vxor.u32 %v1340, 2147483648
    %v1355 = vmul.f32 %v1354, 1.442695
    %v1356 = vpow.pop %v1355
    %v1357 = vadd.f32 %v1356, 1.0
    %v1358 = vrcp.pop %v1357
    %v1359 = vmul.f32 1.0, %v1358
    %v1360 = vmul.f32 %v1352, %v1188
    %v1361 = vmul.f32 %v1346, %v1353
    %v1362 = vadd.f32 %v1360, %v1361
    %v1363 = vtanh.pop %v1362
    %v1364 = vmul.f32 %v1359, %v1363
    %v1365 = vld [vmem:[#allocation2 + $0xa0] sm:$0xff]
    %v1366 = vld [vmem:[#allocation2 + $0xa8] sm:$0xff]
    %v1367 = vld [vmem:[#allocation2 + $0xb0] sm:$0xff]
    %v1368 = vld [vmem:[#allocation2 + $0xb8] sm:$0xff]
    %1369 = vmatprep.subr.mxu0 %v436
    %1370 = vmatpush1.msra.mxu0 %v435
    %1371 = vmatprep.subr.mxu0 %v440
    %1372 = vmatpush1.msra.mxu0 %v439
    %1373 = vmatprep.subr.mxu0 %v444
    %1374 = vmatpush1.msra.mxu0 %v443
    %1375 = vmatprep.subr.mxu0 %v448
    %1376 = vmatpush1.msra.mxu0 %v447
    %1377 = vmatprep.subr.mxu0 %v452
    %1378 = vmatpush1.msra.mxu0 %v451
    %1379 = vmatprep.subr.mxu0 %v456
    %1380 = vmatpush1.msra.mxu0 %v455
    %1381 = vmatprep.subr.mxu0 %v460
    %1382 = vmatpush1.msra.mxu0 %v459
    %1383 = vmatprep.subr.mxu0 %v464
    %1384 = vmatpush1.msra.mxu0 %v463
    %1385 = vmatprep.subr.mxu0 %v468
    %1386 = vmatpush1.msra.mxu0 %v467
    %1387 = vmatprep.subr.mxu0 %v472
    %1388 = vmatpush1.msra.mxu0 %v471
    %1389 = vmatprep.subr.mxu0 %v476
    %1390 = vmatpush1.msra.mxu0 %v475
    %1391 = vmatprep.subr.mxu0 %v480
    %1392 = vmatpush1.msra.mxu0 %v479
    %1393 = vmatprep.subr.mxu0 %v484
    %1394 = vmatpush1.msra.mxu0 %v483
    %1395 = vmatprep.subr.mxu0 %v488
    %1396 = vmatpush1.msra.mxu0 %v487
    %1397 = vmatprep.subr.mxu0 %v492
    %1398 = vmatpush1.msra.mxu0 %v491
    %1399 = vmatprep.subr.mxu0 %v496
    %1400 = vmatpush1.msra.mxu0 %v495
    %1401 = vmatprep.subr.mxu0 0.0
    %1402 = vmatpush1.msra.mxu0 0.0
    %1403 = vmatprep.subr.mxu0 0.0
    %1404 = vmatpush1.msra.mxu0 0.0
    %1405 = vmatprep.subr.mxu0 0.0
    %1406 = vmatpush1.msra.mxu0 0.0
    %1407 = vmatprep.subr.mxu0 0.0
    %1408 = vmatpush1.msra.mxu0 0.0
    %1409 = vmatprep.subr.mxu0 0.0
    %1410 = vmatpush1.msra.mxu0 0.0
    %1411 = vmatprep.subr.mxu0 0.0
    %1412 = vmatpush1.msra.mxu0 0.0
    %1413 = vmatprep.subr.mxu0 0.0
    %1414 = vmatpush1.msra.mxu0 0.0
    %1415 = vmatprep.subr.mxu0 0.0
    %1416 = vmatpush1.msra.mxu0 0.0
    %1417 = vmatprep.subr.mxu0 0.0
    %1418 = vmatpush1.msra.mxu0 0.0
    %1419 = vmatprep.subr.mxu0 0.0
    %1420 = vmatpush1.msra.mxu0 0.0
    %1421 = vmatprep.subr.mxu0 0.0
    %1422 = vmatpush1.msra.mxu0 0.0
    %1423 = vmatprep.subr.mxu0 0.0
    %1424 = vmatpush1.msra.mxu0 0.0
    %1425 = vmatprep.subr.mxu0 0.0
    %1426 = vmatpush1.msra.mxu0 0.0
    %1427 = vmatprep.subr.mxu0 0.0
    %1428 = vmatpush1.msra.mxu0 0.0
    %1429 = vmatprep.subr.mxu0 0.0
    %1430 = vmatpush1.msra.mxu0 0.0
    %1431 = vmatprep.subr.mxu0 0.0
    %1432 = vmatpush1.msra.mxu0 0.0
    %1433 = vmatprep.mubr.f32.mxu0 0.0
    %1434 = vmatmul.mubr.f32.gmra.mrb[0].mxu0 %v1364
    %v1435 = vpop.f32.mrb[0].mxu0
    %v1436 = vadd.f32 0.0, %v1435
    %v1437 = vpop.f32.mrb[0].mxu0
    %v1438 = vadd.f32 0.0, %v1437
    %1439 = vdwg.mxu0
    %1440 = vmatprep.subr.mxu0 %v438
    %1441 = vmatpush1.msra.mxu0 %v437
    %1442 = vmatprep.subr.mxu0 %v442
    %1443 = vmatpush1.msra.mxu0 %v441
    %1444 = vmatprep.subr.mxu0 %v446
    %1445 = vmatpush1.msra.mxu0 %v445
    %1446 = vmatprep.subr.mxu0 %v450
    %1447 = vmatpush1.msra.mxu0 %v449
    %1448 = vmatprep.subr.mxu0 %v454
    %1449 = vmatpush1.msra.mxu0 %v453
    %1450 = vmatprep.subr.mxu0 %v458
    %1451 = vmatpush1.msra.mxu0 %v457
    %1452 = vmatprep.subr.mxu0 %v462
    %1453 = vmatpush1.msra.mxu0 %v461
    %1454 = vmatprep.subr.mxu0 %v466
    %1455 = vmatpush1.msra.mxu0 %v465
    %1456 = vmatprep.subr.mxu0 %v470
    %1457 = vmatpush1.msra.mxu0 %v469
    %1458 = vmatprep.subr.mxu0 %v474
    %1459 = vmatpush1.msra.mxu0 %v473
    %1460 = vmatprep.subr.mxu0 %v478
    %1461 = vmatpush1.msra.mxu0 %v477
    %1462 = vmatprep.subr.mxu0 %v482
    %1463 = vmatpush1.msra.mxu0 %v481
    %1464 = vmatprep.subr.mxu0 %v486
    %1465 = vmatpush1.msra.mxu0 %v485
    %1466 = vmatprep.subr.mxu0 %v490
    %1467 = vmatpush1.msra.mxu0 %v489
    %1468 = vmatprep.subr.mxu0 %v494
    %1469 = vmatpush1.msra.mxu0 %v493
    %1470 = vmatprep.subr.mxu0 %v498
    %1471 = vmatpush1.msra.mxu0 %v497
    %1472 = vmatprep.subr.mxu0 0.0
    %1473 = vmatpush1.msra.mxu0 0.0
    %1474 = vmatprep.subr.mxu0 0.0
    %1475 = vmatpush1.msra.mxu0 0.0
    %1476 = vmatprep.subr.mxu0 0.0
    %1477 = vmatpush1.msra.mxu0 0.0
    %1478 = vmatprep.subr.mxu0 0.0
    %1479 = vmatpush1.msra.mxu0 0.0
    %1480 = vmatprep.subr.mxu0 0.0
    %1481 = vmatpush1.msra.mxu0 0.0
    %1482 = vmatprep.subr.mxu0 0.0
    %1483 = vmatpush1.msra.mxu0 0.0
    %1484 = vmatprep.subr.mxu0 0.0
    %1485 = vmatpush1.msra.mxu0 0.0
    %1486 = vmatprep.subr.mxu0 0.0
    %1487 = vmatpush1.msra.mxu0 0.0
    %1488 = vmatprep.subr.mxu0 0.0
    %1489 = vmatpush1.msra.mxu0 0.0
    %1490 = vmatprep.subr.mxu0 0.0
    %1491 = vmatpush1.msra.mxu0 0.0
    %1492 = vmatprep.subr.mxu0 0.0
    %1493 = vmatpush1.msra.mxu0 0.0
    %1494 = vmatprep.subr.mxu0 0.0
    %1495 = vmatpush1.msra.mxu0 0.0
    %1496 = vmatprep.subr.mxu0 0.0
    %1497 = vmatpush1.msra.mxu0 0.0
    %1498 = vmatprep.subr.mxu0 0.0
    %1499 = vmatpush1.msra.mxu0 0.0
    %1500 = vmatprep.subr.mxu0 0.0
    %1501 = vmatpush1.msra.mxu0 0.0
    %1502 = vmatprep.subr.mxu0 0.0
    %1503 = vmatpush1.msra.mxu0 0.0
    %1504 = vmatprep.mubr.f32.mxu0 0.0
    %1505 = vmatmul.mubr.f32.gmra.mrb[0].mxu0 %v1364
    %v1506 = vpop.f32.mrb[0].mxu0
    %v1507 = vadd.f32 0.0, %v1506
    %v1508 = vpop.f32.mrb[0].mxu0
    %v1509 = vadd.f32 0.0, %v1508
    %1510 = vdwg.mxu0
    %v1511 = vadd.f32 %v1365, %v1436
    %v1512 = vadd.f32 %v1366, %v1438
    %v1513 = vadd.f32 %v1367, %v1507
    %v1514 = vadd.f32 %v1368, %v1509
    %v1515 = vxor.u32 %v1511, 2147483648
    %v1516 = vmul.f32 %v1515, 1.442695
    %v1517 = vpow.pop %v1516
    %v1518 = vadd.f32 %v1517, 1.0
    %v1519 = vrcp.pop %v1518
    %v1520 = vmul.f32 1.0, %v1519
    %v1521 = vxor.u32 %v1512, 2147483648
    %v1522 = vmul.f32 %v1521, 1.442695
    %v1523 = vpow.pop %v1522
    %v1524 = vadd.f32 %v1523, 1.0
    %v1525 = vrcp.pop %v1524
    %v1526 = vmul.f32 1.0, %v1525
    %v1527 = vtanh.pop %v1513
    %v1528 = vxor.u32 %v1514, 2147483648
    %v1529 = vmul.f32 %v1528, 1.442695
    %v1530 = vpow.pop %v1529
    %v1531 = vadd.f32 %v1530, 1.0
    %v1532 = vrcp.pop %v1531
    %v1533 = vmul.f32 1.0, %v1532
    %v1534 = vmul.f32 %v1526, %v1362
    %v1535 = vmul.f32 %v1520, %v1527
    %v1536 = vadd.f32 %v1534, %v1535
    %v1537 = vtanh.pop %v1536
    %v1538 = vmul.f32 %v1533, %v1537
    %v1539 = vld [vmem:[#allocation2 + $0xc0] sm:$0xff]
    %v1540 = vld [vmem:[#allocation2 + $0xc8] sm:$0xff]
    %v1541 = vld [vmem:[#allocation2 + $0xd0] sm:$0xff]
    %v1542 = vld [vmem:[#allocation2 + $0xd8] sm:$0xff]
    %1543 = vmatprep.subr.mxu0 %v436
    %1544 = vmatpush1.msra.mxu0 %v435
    %1545 = vmatprep.subr.mxu0 %v440
    %1546 = vmatpush1.msra.mxu0 %v439
    %1547 = vmatprep.subr.mxu0 %v444
    %1548 = vmatpush1.msra.mxu0 %v443
    %1549 = vmatprep.subr.mxu0 %v448
    %1550 = vmatpush1.msra.mxu0 %v447
    %1551 = vmatprep.subr.mxu0 %v452
    %1552 = vmatpush1.msra.mxu0 %v451
    %1553 = vmatprep.subr.mxu0 %v456
    %1554 = vmatpush1.msra.mxu0 %v455
    %1555 = vmatprep.subr.mxu0 %v460
    %1556 = vmatpush1.msra.mxu0 %v459
    %1557 = vmatprep.subr.mxu0 %v464
    %1558 = vmatpush1.msra.mxu0 %v463
    %1559 = vmatprep.subr.mxu0 %v468
    %1560 = vmatpush1.msra.mxu0 %v467
    %1561 = vmatprep.subr.mxu0 %v472
    %1562 = vmatpush1.msra.mxu0 %v471
    %1563 = vmatprep.subr.mxu0 %v476
    %1564 = vmatpush1.msra.mxu0 %v475
    %1565 = vmatprep.subr.mxu0 %v480
    %1566 = vmatpush1.msra.mxu0 %v479
    %1567 = vmatprep.subr.mxu0 %v484
    %1568 = vmatpush1.msra.mxu0 %v483
    %1569 = vmatprep.subr.mxu0 %v488
    %1570 = vmatpush1.msra.mxu0 %v487
    %1571 = vmatprep.subr.mxu0 %v492
    %1572 = vmatpush1.msra.mxu0 %v491
    %1573 = vmatprep.subr.mxu0 %v496
    %1574 = vmatpush1.msra.mxu0 %v495
    %1575 = vmatprep.subr.mxu0 0.0
    %1576 = vmatpush1.msra.mxu0 0.0
    %1577 = vmatprep.subr.mxu0 0.0
    %1578 = vmatpush1.msra.mxu0 0.0
    %1579 = vmatprep.subr.mxu0 0.0
    %1580 = vmatpush1.msra.mxu0 0.0
    %1581 = vmatprep.subr.mxu0 0.0
    %1582 = vmatpush1.msra.mxu0 0.0
    %1583 = vmatprep.subr.mxu0 0.0
    %1584 = vmatpush1.msra.mxu0 0.0
    %1585 = vmatprep.subr.mxu0 0.0
    %1586 = vmatpush1.msra.mxu0 0.0
    %1587 = vmatprep.subr.mxu0 0.0
    %1588 = vmatpush1.msra.mxu0 0.0
    %1589 = vmatprep.subr.mxu0 0.0
    %1590 = vmatpush1.msra.mxu0 0.0
    %1591 = vmatprep.subr.mxu0 0.0
    %1592 = vmatpush1.msra.mxu0 0.0
    %1593 = vmatprep.subr.mxu0 0.0
    %1594 = vmatpush1.msra.mxu0 0.0
    %1595 = vmatprep.subr.mxu0 0.0
    %1596 = vmatpush1.msra.mxu0 0.0
    %1597 = vmatprep.subr.mxu0 0.0
    %1598 = vmatpush1.msra.mxu0 0.0
    %1599 = vmatprep.subr.mxu0 0.0
    %1600 = vmatpush1.msra.mxu0 0.0
    %1601 = vmatprep.subr.mxu0 0.0
    %1602 = vmatpush1.msra.mxu0 0.0
    %1603 = vmatprep.subr.mxu0 0.0
    %1604 = vmatpush1.msra.mxu0 0.0
    %1605 = vmatprep.subr.mxu0 0.0
    %1606 = vmatpush1.msra.mxu0 0.0
    %1607 = vmatprep.mubr.f32.mxu0 0.0
    %1608 = vmatmul.mubr.f32.gmra.mrb[0].mxu0 %v1538
    %v1609 = vpop.f32.mrb[0].mxu0
    %v1610 = vadd.f32 0.0, %v1609
    %v1611 = vpop.f32.mrb[0].mxu0
    %v1612 = vadd.f32 0.0, %v1611
    %1613 = vdwg.mxu0
    %1614 = vmatprep.subr.mxu0 %v438
    %1615 = vmatpush1.msra.mxu0 %v437
    %1616 = vmatprep.subr.mxu0 %v442
    %1617 = vmatpush1.msra.mxu0 %v441
    %1618 = vmatprep.subr.mxu0 %v446
    %1619 = vmatpush1.msra.mxu0 %v445
    %1620 = vmatprep.subr.mxu0 %v450
    %1621 = vmatpush1.msra.mxu0 %v449
    %1622 = vmatprep.subr.mxu0 %v454
    %1623 = vmatpush1.msra.mxu0 %v453
    %1624 = vmatprep.subr.mxu0 %v458
    %1625 = vmatpush1.msra.mxu0 %v457
    %1626 = vmatprep.subr.mxu0 %v462
    %1627 = vmatpush1.msra.mxu0 %v461
    %1628 = vmatprep.subr.mxu0 %v466
    %1629 = vmatpush1.msra.mxu0 %v465
    %1630 = vmatprep.subr.mxu0 %v470
    %1631 = vmatpush1.msra.mxu0 %v469
    %1632 = vmatprep.subr.mxu0 %v474
    %1633 = vmatpush1.msra.mxu0 %v473
    %1634 = vmatprep.subr.mxu0 %v478
    %1635 = vmatpush1.msra.mxu0 %v477
    %1636 = vmatprep.subr.mxu0 %v482
    %1637 = vmatpush1.msra.mxu0 %v481
    %1638 = vmatprep.subr.mxu0 %v486
    %1639 = vmatpush1.msra.mxu0 %v485
    %1640 = vmatprep.subr.mxu0 %v490
    %1641 = vmatpush1.msra.mxu0 %v489
    %1642 = vmatprep.subr.mxu0 %v494
    %1643 = vmatpush1.msra.mxu0 %v493
    %1644 = vmatprep.subr.mxu0 %v498
    %1645 = vmatpush1.msra.mxu0 %v497
    %1646 = vmatprep.subr.mxu0 0.0
    %1647 = vmatpush1.msra.mxu0 0.0
    %1648 = vmatprep.subr.mxu0 0.0
    %1649 = vmatpush1.msra.mxu0 0.0
    %1650 = vmatprep.subr.mxu0 0.0
    %1651 = vmatpush1.msra.mxu0 0.0
    %1652 = vmatprep.subr.mxu0 0.0
    %1653 = vmatpush1.msra.mxu0 0.0
    %1654 = vmatprep.subr.mxu0 0.0
    %1655 = vmatpush1.msra.mxu0 0.0
    %1656 = vmatprep.subr.mxu0 0.0
    %1657 = vmatpush1.msra.mxu0 0.0
    %1658 = vmatprep.subr.mxu0 0.0
    %1659 = vmatpush1.msra.mxu0 0.0
    %1660 = vmatprep.subr.mxu0 0.0
    %1661 = vmatpush1.msra.mxu0 0.0
    %1662 = vmatprep.subr.mxu0 0.0
    %1663 = vmatpush1.msra.mxu0 0.0
    %1664 = vmatprep.subr.mxu0 0.0
    %1665 = vmatpush1.msra.mxu0 0.0
    %1666 = vmatprep.subr.mxu0 0.0
    %1667 = vmatpush1.msra.mxu0 0.0
    %1668 = vmatprep.subr.mxu0 0.0
    %1669 = vmatpush1.msra.mxu0 0.0
    %1670 = vmatprep.subr.mxu0 0.0
    %1671 = vmatpush1.msra.mxu0 0.0
    %1672 = vmatprep.subr.mxu0 0.0
    %1673 = vmatpush1.msra.mxu0 0.0
    %1674 = vmatprep.subr.mxu0 0.0
    %1675 = vmatpush1.msra.mxu0 0.0
    %1676 = vmatprep.subr.mxu0 0.0
    %1677 = vmatpush1.msra.mxu0 0.0
    %1678 = vmatprep.mubr.f32.mxu0 0.0
    %1679 = vmatmul.mubr.f32.gmra.mrb[0].mxu0 %v1538
    %v1680 = vpop.f32.mrb[0].mxu0
    %v1681 = vadd.f32 0.0, %v1680
    %v1682 = vpop.f32.mrb[0].mxu0
    %v1683 = vadd.f32 0.0, %v1682
    %1684 = vdwg.mxu0
    %v1685 = vadd.f32 %v1539, %v1610
    %v1686 = vadd.f32 %v1540, %v1612
    %v1687 = vadd.f32 %v1541, %v1681
    %v1688 = vadd.f32 %v1542, %v1683
    %v1689 = vxor.u32 %v1685, 2147483648
    %v1690 = vmul.f32 %v1689, 1.442695
    %v1691 = vpow.pop %v1690
    %v1692 = vadd.f32 %v1691, 1.0
    %v1693 = vrcp.pop %v1692
    %v1694 = vmul.f32 1.0, %v1693
    %v1695 = vxor.u32 %v1686, 2147483648
    %v1696 = vmul.f32 %v1695, 1.442695
    %v1697 = vpow.pop %v1696
    %v1698 = vadd.f32 %v1697, 1.0
    %v1699 = vrcp.pop %v1698
    %v1700 = vmul.f32 1.0, %v1699
    %v1701 = vtanh.pop %v1687
    %v1702 = vxor.u32 %v1688, 2147483648
    %v1703 = vmul.f32 %v1702, 1.442695
    %v1704 = vpow.pop %v1703
    %v1705 = vadd.f32 %v1704, 1.0
    %v1706 = vrcp.pop %v1705
    %v1707 = vmul.f32 1.0, %v1706
    %v1708 = vmul.f32 %v1700, %v1536
    %v1709 = vmul.f32 %v1694, %v1701
    %v1710 = vadd.f32 %v1708, %v1709
    %v1711 = vtanh.pop %v1710
    %v1712 = vmul.f32 %v1707, %v1711
    %v1713 = vld [vmem:[#allocation2 + $0xe0] sm:$0xff]
    %v1714 = vld [vmem:[#allocation2 + $0xe8] sm:$0xff]
    %v1715 = vld [vmem:[#allocation2 + $0xf0] sm:$0xff]
    %v1716 = vld [vmem:[#allocation2 + $0xf8] sm:$0xff]
    %1717 = vmatprep.subr.mxu0 %v436
    %1718 = vmatpush1.msra.mxu0 %v435
    %1719 = vmatprep.subr.mxu0 %v440
    %1720 = vmatpush1.msra.mxu0 %v439
    %1721 = vmatprep.subr.mxu0 %v444
    %1722 = vmatpush1.msra.mxu0 %v443
    %1723 = vmatprep.subr.mxu0 %v448
    %1724 = vmatpush1.msra.mxu0 %v447
    %1725 = vmatprep.subr.mxu0 %v452
    %1726 = vmatpush1.msra.mxu0 %v451
    %1727 = vmatprep.subr.mxu0 %v456
    %1728 = vmatpush1.msra.mxu0 %v455
    %1729 = vmatprep.subr.mxu0 %v460
    %1730 = vmatpush1.msra.mxu0 %v459
    %1731 = vmatprep.subr.mxu0 %v464
    %1732 = vmatpush1.msra.mxu0 %v463
    %1733 = vmatprep.subr.mxu0 %v468
    %1734 = vmatpush1.msra.mxu0 %v467
    %1735 = vmatprep.subr.mxu0 %v472
    %1736 = vmatpush1.msra.mxu0 %v471
    %1737 = vmatprep.subr.mxu0 %v476
    %1738 = vmatpush1.msra.mxu0 %v475
    %1739 = vmatprep.subr.mxu0 %v480
    %1740 = vmatpush1.msra.mxu0 %v479
    %1741 = vmatprep.subr.mxu0 %v484
    %1742 = vmatpush1.msra.mxu0 %v483
    %1743 = vmatprep.subr.mxu0 %v488
    %1744 = vmatpush1.msra.mxu0 %v487
    %1745 = vmatprep.subr.mxu0 %v492
    %1746 = vmatpush1.msra.mxu0 %v491
    %1747 = vmatprep.subr.mxu0 %v496
    %1748 = vmatpush1.msra.mxu0 %v495
    %1749 = vmatprep.subr.mxu0 0.0
    %1750 = vmatpush1.msra.mxu0 0.0
    %1751 = vmatprep.subr.mxu0 0.0
    %1752 = vmatpush1.msra.mxu0 0.0
    %1753 = vmatprep.subr.mxu0 0.0
    %1754 = vmatpush1.msra.mxu0 0.0
    %1755 = vmatprep.subr.mxu0 0.0
    %1756 = vmatpush1.msra.mxu0 0.0
    %1757 = vmatprep.subr.mxu0 0.0
    %1758 = vmatpush1.msra.mxu0 0.0
    %1759 = vmatprep.subr.mxu0 0.0
    %1760 = vmatpush1.msra.mxu0 0.0
    %1761 = vmatprep.subr.mxu0 0.0
    %1762 = vmatpush1.msra.mxu0 0.0
    %1763 = vmatprep.subr.mxu0 0.0
    %1764 = vmatpush1.msra.mxu0 0.0
    %1765 = vmatprep.subr.mxu0 0.0
    %1766 = vmatpush1.msra.mxu0 0.0
    %1767 = vmatprep.subr.mxu0 0.0
    %1768 = vmatpush1.msra.mxu0 0.0
    %1769 = vmatprep.subr.mxu0 0.0
    %1770 = vmatpush1.msra.mxu0 0.0
    %1771 = vmatprep.subr.mxu0 0.0
    %1772 = vmatpush1.msra.mxu0 0.0
    %1773 = vmatprep.subr.mxu0 0.0
    %1774 = vmatpush1.msra.mxu0 0.0
    %1775 = vmatprep.subr.mxu0 0.0
    %1776 = vmatpush1.msra.mxu0 0.0
    %1777 = vmatprep.subr.mxu0 0.0
    %1778 = vmatpush1.msra.mxu0 0.0
    %1779 = vmatprep.subr.mxu0 0.0
    %1780 = vmatpush1.msra.mxu0 0.0
    %1781 = vmatprep.mubr.f32.mxu0 0.0
    %1782 = vmatmul.mubr.f32.gmra.mrb[0].mxu0 %v1712
    %v1783 = vpop.f32.mrb[0].mxu0
    %v1784 = vadd.f32 0.0, %v1783
    %v1785 = vpop.f32.mrb[0].mxu0
    %v1786 = vadd.f32 0.0, %v1785
    %1787 = vdwg.mxu0
    %1788 = vmatprep.subr.mxu0 %v438
    %1789 = vmatpush1.msra.mxu0 %v437
    %1790 = vmatprep.subr.mxu0 %v442
    %1791 = vmatpush1.msra.mxu0 %v441
    %1792 = vmatprep.subr.mxu0 %v446
    %1793 = vmatpush1.msra.mxu0 %v445
    %1794 = vmatprep.subr.mxu0 %v450
    %1795 = vmatpush1.msra.mxu0 %v449
    %1796 = vmatprep.subr.mxu0 %v454
    %1797 = vmatpush1.msra.mxu0 %v453
    %1798 = vmatprep.subr.mxu0 %v458
    %1799 = vmatpush1.msra.mxu0 %v457
    %1800 = vmatprep.subr.mxu0 %v462
    %1801 = vmatpush1.msra.mxu0 %v461
    %1802 = vmatprep.subr.mxu0 %v466
    %1803 = vmatpush1.msra.mxu0 %v465
    %1804 = vmatprep.subr.mxu0 %v470
    %1805 = vmatpush1.msra.mxu0 %v469
    %1806 = vmatprep.subr.mxu0 %v474
    %1807 = vmatpush1.msra.mxu0 %v473
    %1808 = vmatprep.subr.mxu0 %v478
    %1809 = vmatpush1.msra.mxu0 %v477
    %1810 = vmatprep.subr.mxu0 %v482
    %1811 = vmatpush1.msra.mxu0 %v481
    %1812 = vmatprep.subr.mxu0 %v486
    %1813 = vmatpush1.msra.mxu0 %v485
    %1814 = vmatprep.subr.mxu0 %v490
    %1815 = vmatpush1.msra.mxu0 %v489
    %1816 = vmatprep.subr.mxu0 %v494
    %1817 = vmatpush1.msra.mxu0 %v493
    %1818 = vmatprep.subr.mxu0 %v498
    %1819 = vmatpush1.msra.mxu0 %v497
    %1820 = vmatprep.subr.mxu0 0.0
    %1821 = vmatpush1.msra.mxu0 0.0
    %1822 = vmatprep.subr.mxu0 0.0
    %1823 = vmatpush1.msra.mxu0 0.0
    %1824 = vmatprep.subr.mxu0 0.0
    %1825 = vmatpush1.msra.mxu0 0.0
    %1826 = vmatprep.subr.mxu0 0.0
    %1827 = vmatpush1.msra.mxu0 0.0
    %1828 = vmatprep.subr.mxu0 0.0
    %1829 = vmatpush1.msra.mxu0 0.0
    %1830 = vmatprep.subr.mxu0 0.0
    %1831 = vmatpush1.msra.mxu0 0.0
    %1832 = vmatprep.subr.mxu0 0.0
    %1833 = vmatpush1.msra.mxu0 0.0
    %1834 = vmatprep.subr.mxu0 0.0
    %1835 = vmatpush1.msra.mxu0 0.0
    %1836 = vmatprep.subr.mxu0 0.0
    %1837 = vmatpush1.msra.mxu0 0.0
    %1838 = vmatprep.subr.mxu0 0.0
    %1839 = vmatpush1.msra.mxu0 0.0
    %1840 = vmatprep.subr.mxu0 0.0
    %1841 = vmatpush1.msra.mxu0 0.0
    %1842 = vmatprep.subr.mxu0 0.0
    %1843 = vmatpush1.msra.mxu0 0.0
    %1844 = vmatprep.subr.mxu0 0.0
    %1845 = vmatpush1.msra.mxu0 0.0
    %1846 = vmatprep.subr.mxu0 0.0
    %1847 = vmatpush1.msra.mxu0 0.0
    %1848 = vmatprep.subr.mxu0 0.0
    %1849 = vmatpush1.msra.mxu0 0.0
    %1850 = vmatprep.subr.mxu0 0.0
    %1851 = vmatpush1.msra.mxu0 0.0
    %1852 = vmatprep.mubr.f32.mxu0 0.0
    %1853 = vmatmul.mubr.f32.gmra.mrb[0].mxu0 %v1712
    %v1854 = vpop.f32.mrb[0].mxu0
    %v1855 = vadd.f32 0.0, %v1854
    %v1856 = vpop.f32.mrb[0].mxu0
    %v1857 = vadd.f32 0.0, %v1856
    %1858 = vdwg.mxu0
    %v1859 = vadd.f32 %v1713, %v1784
    %v1860 = vadd.f32 %v1714, %v1786
    %v1861 = vadd.f32 %v1715, %v1855
    %v1862 = vadd.f32 %v1716, %v1857
    %v1863 = vxor.u32 %v1859, 2147483648
    %v1864 = vmul.f32 %v1863, 1.442695
    %v1865 = vpow.pop %v1864
    %v1866 = vadd.f32 %v1865, 1.0
    %v1867 = vrcp.pop %v1866
    %v1868 = vmul.f32 1.0, %v1867
    %v1869 = vxor.u32 %v1860, 2147483648
    %v1870 = vmul.f32 %v1869, 1.442695
    %v1871 = vpow.pop %v1870
    %v1872 = vadd.f32 %v1871, 1.0
    %v1873 = vrcp.pop %v1872
    %v1874 = vmul.f32 1.0, %v1873
    %v1875 = vtanh.pop %v1861
    %v1876 = vxor.u32 %v1862, 2147483648
    %v1877 = vmul.f32 %v1876, 1.442695
    %v1878 = vpow.pop %v1877
    %v1879 = vadd.f32 %v1878, 1.0
    %v1880 = vrcp.pop %v1879
    %v1881 = vmul.f32 1.0, %v1880
    %v1882 = vmul.f32 %v1874, %v1710
    %v1883 = vmul.f32 %v1868, %v1875
    %v1884 = vadd.f32 %v1882, %v1883
    %v1885 = vtanh.pop %v1884
    %v1886 = vmul.f32 %v1881, %v1885
    %v1887 = vld [vmem:[#allocation9] sm:$0xff]
    %v1888 = vld [vmem:[#allocation9 + $0x8] sm:$0xff]
    %v1889 = vld [vmem:[#allocation9 + $0x10] sm:$0xff]
    %v1890 = vld [vmem:[#allocation9 + $0x18] sm:$0xff]
    %v1891 = vld [vmem:[#allocation9 + $0x20] sm:$0xff]
    %v1892 = vld [vmem:[#allocation9 + $0x28] sm:$0xff]
    %v1893 = vld [vmem:[#allocation9 + $0x30] sm:$0xff]
    %v1894 = vld [vmem:[#allocation9 + $0x38] sm:$0xff]
    %v1895 = vld [vmem:[#allocation9 + $0x40] sm:$0xff]
    %v1896 = vld [vmem:[#allocation9 + $0x48] sm:$0xff]
    %v1897 = vld [vmem:[#allocation9 + $0x50] sm:$0xff]
    %v1898 = vld [vmem:[#allocation9 + $0x58] sm:$0xff]
    %v1899 = vld [vmem:[#allocation9 + $0x60] sm:$0xff]
    %v1900 = vld [vmem:[#allocation9 + $0x68] sm:$0xff]
    %v1901 = vld [vmem:[#allocation9 + $0x70] sm:$0xff]
    %v1902 = vld [vmem:[#allocation9 + $0x78] sm:$0xff]
    %v1903 = vld [vmem:[%s5] sm:$0x1]
    %v1905 = vlaneseq
    %v1906 = vshrl.u32 %v1905, 7
    %v1907 = vsub.s32 0, %v1906
    %v1908 = vrot.slane %v1903, %v1907
    %1910 = vmatprep.subr.mxu0 0.0
    %1911 = vmatpush1.msra.mxu0 %v1887
    %1912 = vmatprep.subr.mxu0 0.0
    %1913 = vmatpush1.msra.mxu0 %v1888
    %1914 = vmatprep.subr.mxu0 0.0
    %1915 = vmatpush1.msra.mxu0 %v1889
    %1916 = vmatprep.subr.mxu0 0.0
    %1917 = vmatpush1.msra.mxu0 %v1890
    %1918 = vmatprep.subr.mxu0 0.0
    %1919 = vmatpush1.msra.mxu0 %v1891
    %1920 = vmatprep.subr.mxu0 0.0
    %1921 = vmatpush1.msra.mxu0 %v1892
    %1922 = vmatprep.subr.mxu0 0.0
    %1923 = vmatpush1.msra.mxu0 %v1893
    %1924 = vmatprep.subr.mxu0 0.0
    %1925 = vmatpush1.msra.mxu0 %v1894
    %1926 = vmatprep.subr.mxu0 0.0
    %1927 = vmatpush1.msra.mxu0 %v1895
    %1928 = vmatprep.subr.mxu0 0.0
    %1929 = vmatpush1.msra.mxu0 %v1896
    %1930 = vmatprep.subr.mxu0 0.0
    %1931 = vmatpush1.msra.mxu0 %v1897
    %1932 = vmatprep.subr.mxu0 0.0
    %1933 = vmatpush1.msra.mxu0 %v1898
    %1934 = vmatprep.subr.mxu0 0.0
    %1935 = vmatpush1.msra.mxu0 %v1899
    %1936 = vmatprep.subr.mxu0 0.0
    %1937 = vmatpush1.msra.mxu0 %v1900
    %1938 = vmatprep.subr.mxu0 0.0
    %1939 = vmatpush1.msra.mxu0 %v1901
    %1940 = vmatprep.subr.mxu0 0.0
    %1941 = vmatpush1.msra.mxu0 %v1902
    %1942 = vmatprep.subr.mxu0 0.0
    %1943 = vmatpush1.msra.mxu0 0.0
    %1944 = vmatprep.subr.mxu0 0.0
    %1945 = vmatpush1.msra.mxu0 0.0
    %1946 = vmatprep.subr.mxu0 0.0
    %1947 = vmatpush1.msra.mxu0 0.0
    %1948 = vmatprep.subr.mxu0 0.0
    %1949 = vmatpush1.msra.mxu0 0.0
    %1950 = vmatprep.subr.mxu0 0.0
    %1951 = vmatpush1.msra.mxu0 0.0
    %1952 = vmatprep.subr.mxu0 0.0
    %1953 = vmatpush1.msra.mxu0 0.0
    %1954 = vmatprep.subr.mxu0 0.0
    %1955 = vmatpush1.msra.mxu0 0.0
    %1956 = vmatprep.subr.mxu0 0.0
    %1957 = vmatpush1.msra.mxu0 0.0
    %1958 = vmatprep.subr.mxu0 0.0
    %1959 = vmatpush1.msra.mxu0 0.0
    %1960 = vmatprep.subr.mxu0 0.0
    %1961 = vmatpush1.msra.mxu0 0.0
    %1962 = vmatprep.subr.mxu0 0.0
    %1963 = vmatpush1.msra.mxu0 0.0
    %1964 = vmatprep.subr.mxu0 0.0
    %1965 = vmatpush1.msra.mxu0 0.0
    %1966 = vmatprep.subr.mxu0 0.0
    %1967 = vmatpush1.msra.mxu0 0.0
    %1968 = vmatprep.subr.mxu0 0.0
    %1969 = vmatpush1.msra.mxu0 0.0
    %1970 = vmatprep.subr.mxu0 0.0
    %1971 = vmatpush1.msra.mxu0 0.0
    %1972 = vmatprep.subr.mxu0 0.0
    %1973 = vmatpush1.msra.mxu0 0.0
    %1974 = vmatprep.mubr.f32.mxu0 0.0
    %1975 = vmatmul.mubr.f32.gmra.mrb[0].mxu0 %v1886
    %v1976 = vpop.f32.mrb[0].mxu0
    %v1977 = vadd.f32 %v1908, %v1976
    %v1978 = vpop.f32.mrb[0].mxu0
    %1979 = vdwg.mxu0
    %1980 = vst [vmem:[#allocation11] sm:$0xff] %v1977
    // Predicated region
    $region42: #{tpu_custom_call.1} parent=1 // pred_check
      _
    $region43: #{tpu_custom_call.1} parent=1 // pred_check_branch
      %1982 = sbr.rel (0) target = $region45
    $region44: #{tpu_custom_call.1} parent=1 // pred_region
      %s1984 = ssub.s32 128, 128
      %1985 = vsyncadd [#allocation5], %s1984
      %s1987 = sshll.u32 [#allocation11], 4
      %s1988 = int_to_ptr.vmem [resolvable:$true] %s1987
      %1990 = dma.vmem_to_hbm [thread:$0]  %s1988, 128, %s6, [#allocation5]
    $region45: #{tpu_custom_call.1} parent=1 // pred_fallthru
      _
    // Predicated region
    $region46: #{tpu_custom_call.1} parent=1 // pred_check
      _
    $region47: #{tpu_custom_call.1} parent=1 // pred_check_branch
      %1992 = sbr.rel (0) target = $region49
    $region48: #{tpu_custom_call.1} parent=1 // pred_region
      %1993 = dma.done [#allocation5], 128
    $region49: #{tpu_custom_call.1} parent=1 // pred_fallthru
      _
    %1994 = vsyncpa [#allocation4], 1
    %1995 = vsyncpa [#allocation7], 1
    %1996 = vsyncpa [#allocation10], 1
    %1997 = vsyncpa [#allocation5], 1

</llo_original>
